<compile_context>
chip_gen: v7x
topology: tpu7x:2x2x1
jax: 0.10.0
libtpu: 0.0.40
codegen_flags: <defaults>
</compile_context>

<pallas_src>
import math
from functools import partial

import jax
import jax.numpy as jnp
import numpy as np
from jax.experimental import pallas as pl
from jax.experimental.pallas import tpu as pltpu


# ----------------------------------------------------------------------------
# Pallas kernels
# ----------------------------------------------------------------------------
def _energy_kernel(fri_ref, dc_ref, o_ref):
    # fri_ref: (G, bc_pad, 2*w_pad)   bf16  per-frequency rfft band [fr | fi]
    # dc_ref : (G, 2*w_pad, 2*n_pad)  bf16  compact folded iDFT matrix [[Dr,Di],[-Di,Dr]]
    # o_ref  : (G, bc_pad, n_pad)     f32   QTile energies
    n_pad = o_ref.shape[-1]
    prod = jnp.einsum("gbw,gwn->gbn", fri_ref[...], dc_ref[...],
                      preferred_element_type=jnp.float32)      # 1 MXU pass per g
    re = prod[..., :n_pad]
    im = prod[..., n_pad:]
    o_ref[...] = re * re + im * im


def pallas_energy(fri_bands, dc_band, group):
    nf_pad, bc_pad, two_w = fri_bands.shape
    _, _, two_n = dc_band.shape
    n_pad = two_n // 2
    return pl.pallas_call(
        _energy_kernel,
        out_shape=jax.ShapeDtypeStruct((nf_pad, bc_pad, n_pad), jnp.float32),
        grid=(nf_pad // group,),
        in_specs=[
            pl.BlockSpec((group, bc_pad, two_w), lambda f: (f, 0, 0)),
            pl.BlockSpec((group, two_w, two_n), lambda f: (f, 0, 0)),
        ],
        out_specs=pl.BlockSpec((group, bc_pad, n_pad), lambda f: (f, 0, 0)),
        compiler_params=pltpu.CompilerParams(
            dimension_semantics=("parallel",)),      # independent per frequency block
    )(fri_bands, dc_band)


def _tinterp_kernel(e_ref, r_ref, wt_ref, o_ref):
    # e_ref : (G, bc_pad, n_pad)  f32   raw tile energies
    # r_ref : (G, bc_pad, 1)      f32   reciprocal of the norm divisor (broadcast here)
    # wt_ref: (G, n_pad, num_t)   bf16  time-interpolation matrix
    # o_ref : (G, bc_pad, num_t)  f32   normalised, time-interpolated tiles
    ne = (e_ref[...] * r_ref[...]).astype(jnp.bfloat16)   # normalise (VPU), then bf16
    o_ref[...] = jnp.einsum("gbn,gnt->gbt", ne, wt_ref[...],
                            preferred_element_type=jnp.float32)


def pallas_norm_tinterp(energies, recip, wt_all, group):
    nf_pad, bc_pad, n_pad = energies.shape
    num_t = wt_all.shape[2]
    return pl.pallas_call(
        _tinterp_kernel,
        out_shape=jax.ShapeDtypeStruct((nf_pad, bc_pad, num_t), jnp.float32),
        grid=(nf_pad // group,),
        in_specs=[
            pl.BlockSpec((group, bc_pad, n_pad), lambda f: (f, 0, 0)),
            pl.BlockSpec((group, bc_pad, 1), lambda f: (f, 0, 0)),
            pl.BlockSpec((group, n_pad, num_t), lambda f: (f, 0, 0)),
        ],
        out_specs=pl.BlockSpec((group, bc_pad, num_t), lambda f: (f, 0, 0)),
        compiler_params=pltpu.CompilerParams(
            dimension_semantics=("parallel",)),      # no cross-frequency accumulation
    )(energies, recip, wt_all)


def _finterp_kernel(mf_ref, nti_ref, o_ref):
    # mf_ref : (num_f, nf_pad)        bf16   frequency-interp matrix (transposed)
    # nti_ref: (nf_pad, bc_pad*num_t) bf16   normalised time-interpolated tiles
    # o_ref  : (num_f, bc_pad*num_t)  f32    final spectrogram (lane-dense store)
    o_ref[...] = jnp.dot(mf_ref[...], nti_ref[...],
                         preferred_element_type=jnp.float32)


def pallas_freq_interp(mf_T, nti2d):
    num_f, nf_pad = mf_T.shape
    _, bt = nti2d.shape
    return pl.pallas_call(
        _finterp_kernel,
        out_shape=jax.ShapeDtypeStruct((num_f, bt), jnp.float32),
        grid=(1,),
        in_specs=[
            pl.BlockSpec((num_f, nf_pad), lambda i: (0, 0)),
            pl.BlockSpec((nf_pad, bt), lambda i: (0, 0)),
        ],
        out_specs=pl.BlockSpec((num_f, bt), lambda i: (0, 0)),
    )(mf_T, nti2d)


# ----------------------------------------------------------------------------
# Parameter construction (deterministic, mirrors the PyTorch __init__)
# ----------------------------------------------------------------------------
def _cubic1(x, a=-0.75):
    return ((a + 2.0) * x - (a + 3.0)) * x * x + 1.0


def _cubic2(x, a=-0.75):
    return ((a * x - 5.0 * a) * x + 8.0 * a) * x - 4.0 * a


def build_cubic_interp_matrix(in_size, out_size):
    """Dense matrix reproducing 1-D cubic interp of F.interpolate(mode='bicubic',
    align_corners=False).  Shape (in_size, out_size)."""
    mat = np.zeros((in_size, out_size), dtype=np.float64)
    scale = in_size / out_size
    for j in range(out_size):
        src = (j + 0.5) * scale - 0.5
        x0 = int(math.floor(src))
        t = src - x0
        w = [_cubic2(t + 1.0), _cubic1(t), _cubic1(1.0 - t), _cubic2(2.0 - t)]
        for k in range(4):
            idx = min(max(x0 - 1 + k, 0), in_size - 1)
            mat[idx, j] += w[k]
    return mat.astype(np.float32)


def build_linear_interp_matrix(in_size, out_size):
    """Dense matrix reproducing 1-D linear interp of F.interpolate(mode='bilinear',
    align_corners=False)."""
    mat = np.zeros((in_size, out_size), dtype=np.float64)
    scale = in_size / out_size
    for j in range(out_size):
        src = max((j + 0.5) * scale - 0.5, 0.0)
        x0 = min(int(math.floor(src)), in_size - 1)
        x1 = min(x0 + 1, in_size - 1)
        t = src - x0
        mat[x0, j] += 1.0 - t
        mat[x1, j] += t
    return mat.astype(np.float32)


def get_freqs(duration, q, mismatch, frange):
    minf, maxf = frange
    fcum_mismatch = math.log(maxf / minf) * (2 + q ** 2) ** 0.5 / 2.0
    deltam = 2 * (mismatch / 3.0) ** 0.5
    nfreq = int(max(1, math.ceil(fcum_mismatch / deltam)))
    fstep = fcum_mismatch / nfreq
    fstepmin = 1.0 / duration
    freq_base = math.exp(2.0 / (2 + q ** 2) ** 0.5 * fstep)
    freqs = np.array([freq_base ** (i + 0.5) for i in range(nfreq)], dtype=np.float32)
    freqs = np.floor(minf * freqs.astype(np.float64) / fstepmin) * fstepmin
    return np.unique(freqs)


def build_qtile_band(q, frequency, duration, sample_rate, mismatch, f_rfft):
    """Fold gather + one-sided 2x scaling + window + zero pad + ifftshift + ifft into a
    COMPACT banded pair of real matrices so that for X = rfft(x, norm='forward'):
        tdenergy = X[start : start + wband] @ (Dr + i*Di)
    Returns (dr_band, di_band, ntiles, start)."""
    qprime = q / math.sqrt(11.0)
    deltam = np.float32(2.0 * (mismatch / 3.0) ** 0.5)
    windowsize = 2 * int(frequency / qprime * duration) + 1
    tcum_mismatch = duration * 2.0 * math.pi * frequency / q
    ntiles = int(2.0 ** math.ceil(float(np.ceil(np.log2(np.float32(tcum_mismatch) / deltam)))))
    pad = ntiles - windowsize
    left = int((pad - 1) / 2.0)
    half = int((windowsize - 1) / 2)
    rel = np.arange(-half, half + 1)

    # bi-square window
    wfreq = rel / duration
    xfreq = wfreq * qprime / frequency
    norm_w = ntiles / (duration * sample_rate) * math.sqrt(315.0 * qprime / (128.0 * frequency))
    window = ((1.0 - xfreq ** 2) ** 2 * norm_w).astype(np.float64)

    data_idx = np.round(rel + 1 + frequency * duration).astype(np.int64)
    if data_idx.min() < 0 or data_idx.max() >= f_rfft:
        raise ValueError("QTile data indices fall outside the rfft range")

    # reference scaling: Xf[..., 1:] *= 2 (Nyquist included) -> folded into the matrix
    scale = np.where(data_idx >= 1, 2.0, 1.0)

    t = np.arange(ntiles)
    m = left + (rel + half) + ntiles // 2          # index after pad + ifftshift (mod ntiles)
    phase = 2.0 * np.pi * (m[:, None].astype(np.float64) * t[None, :]) / ntiles
    coef = (scale * window / ntiles)[:, None]
    dr = coef * np.cos(phase)                      # (windowsize, ntiles)
    di = coef * np.sin(phase)

    start = int(data_idx.min())
    wband = int(data_idx.max()) - start + 1        # contiguous rfft band (handles ties)
    dr_band = np.zeros((wband, ntiles), np.float64)
    di_band = np.zeros((wband, ntiles), np.float64)
    np.add.at(dr_band, data_idx - start, dr)
    np.add.at(di_band, data_idx - start, di)
    return dr_band, di_band, ntiles, start


def _pick_group(n, max_g=4):
    """Frequencies per grid step (amortise per-step overhead); prefer exact divisors."""
    if n <= max_g:
        return max(n, 1)
    for g in range(max_g, 1, -1):
        if n % g == 0:
            return g
    return max_g   # nfreq is padded up; padded rows are all-zero and contribute nothing


# ----------------------------------------------------------------------------
# Fused forward (jitted glue around the three Pallas kernels)
# ----------------------------------------------------------------------------
@partial(jax.jit, static_argnames=("norm", "group"))
def _qtransform_forward(X, band_idx, dc_band, wt_all, mf_T, valid_mask,
                        med_lo, med_hi, med_frac, ntiles_f32, norm, group):
    B, C, T = X.shape
    BC = B * C
    bc_pad = max(8, 8 * ((BC + 7) // 8))
    nf_pad, _, two_n = dc_band.shape
    n_pad = two_n // 2
    f_rfft = T // 2 + 1
    num_t = wt_all.shape[2]
    num_f = mf_T.shape[0]

    # TODO(synk): rfft has no Pallas TPU lowering; computed with XLA (setup glue).
    Xf = jnp.fft.rfft(X.astype(jnp.float32), norm="forward")
    fr = jnp.real(Xf).reshape(BC, f_rfft)
    fi = jnp.imag(Xf).reshape(BC, f_rfft)

    # Per-frequency contiguous rfft band (tiny XLA gather feeding the banded matmul).
    frb = fr[:, band_idx]                                    # (BC, nf_pad, w_pad)
    fib = fi[:, band_idx]
    fri = jnp.concatenate([frb, fib], axis=-1)               # (BC, nf_pad, 2*w_pad)
    fri = jnp.transpose(fri, (1, 0, 2))                      # (nf_pad, BC, 2*w_pad)
    fri = jnp.pad(fri, ((0, 0), (0, bc_pad - BC), (0, 0))).astype(jnp.bfloat16)

    energies = pallas_energy(fri, dc_band, group)            # (nf_pad, bc_pad, n_pad) f32

    if norm:
        n = norm.lower() if isinstance(norm, str) else norm
        if n == "median":
            # TODO(synk): exact median needs a sort; no clean Pallas TPU sort, so it is
            # ONE batched, length-masked XLA sort over all frequencies at once.
            masked = jnp.where(valid_mask, energies, jnp.inf)
            srt = jnp.sort(masked, axis=-1)
            lo = jnp.take_along_axis(
                srt, jnp.broadcast_to(med_lo[:, None, None], (nf_pad, bc_pad, 1)), axis=-1)
            hi = jnp.take_along_axis(
                srt, jnp.broadcast_to(med_hi[:, None, None], (nf_pad, bc_pad, 1)), axis=-1)
            frac = med_frac[:, None, None]
            div = lo * (1.0 - frac) + hi * frac
        elif n == "mean":
            div = jnp.sum(energies, axis=-1, keepdims=True) / ntiles_f32[:, None, None]
        else:
            raise ValueError("Invalid normalisation %r" % norm)
        # guard padded frequency/batch rows (zero or inf divisors) -> contribute nothing
        recip = jnp.where((div > 0) & jnp.isfinite(div), 1.0 / div, 0.0)
    else:
        recip = jnp.ones((nf_pad, bc_pad, 1), jnp.float32)
    recip = recip.astype(jnp.float32)

    # normalise + time interpolation, one block of `group` frequencies per grid step
    nti = pallas_norm_tinterp(energies, recip, wt_all, group)   # (nf_pad, bc_pad, num_t)

    # frequency interpolation as one lane-dense matmul (outside the frequency loop)
    nti2d = nti.reshape(nf_pad, bc_pad * num_t).astype(jnp.bfloat16)
    out2d = pallas_freq_interp(mf_T, nti2d)                      # (num_f, bc_pad*num_t)

    out = out2d.reshape(num_f, bc_pad, num_t)[:, :BC, :]
    out = jnp.transpose(out, (1, 0, 2)).reshape(B, C, num_f, num_t)
    # torch.squeeze semantics (drops ALL singleton dims), matching the reference module.
    return jnp.squeeze(out)


# ----------------------------------------------------------------------------
# SingleQTransform
# ----------------------------------------------------------------------------
class SingleQTransformPallas:
    def __init__(self, duration, sample_rate, spectrogram_shape, q=12,
                 frange=None, mismatch=0.2, interpolation_method="bicubic"):
        self.q = q
        self.spectrogram_shape = spectrogram_shape
        self.duration = duration
        self.sample_rate = sample_rate
        self.mismatch = mismatch

        max_q = math.pi * duration * sample_rate / 50 - 11 ** 0.5
        if q >= max_q:
            raise ValueError("q too large for the given duration and sample rate")
        if interpolation_method not in ("bilinear", "bicubic", "spline"):
            raise ValueError("bad interpolation method")
        if interpolation_method == "spline":
            # TODO(synk): spline interpolation (matrix-equation solve) not implemented.
            raise NotImplementedError("spline interpolation not supported")
        self.interpolation_method = interpolation_method

        frange = list(frange) if frange is not None else [0, math.inf]
        qprime = q / 11 ** 0.5
        if frange[0] <= 0:
            frange[0] = 50 * q / (2 * math.pi * duration)
        if math.isinf(frange[1]):
            frange[1] = sample_rate / 2 / (1 + 1 / qprime)
        self.frange = frange

        self.freqs = get_freqs(duration, q, mismatch, frange)
        nfreq = len(self.freqs)
        num_f_bins, num_t_bins = spectrogram_shape

        T = int(duration * sample_rate)
        f_rfft = T // 2 + 1

        build_1d = (build_cubic_interp_matrix if interpolation_method == "bicubic"
                    else build_linear_interp_matrix)

        rows = [build_qtile_band(q, float(f), duration, sample_rate, mismatch, f_rfft)
                for f in self.freqs]
        ntiles_np = np.array([r[2] for r in rows], np.int64)
        wband_np = np.array([r[0].shape[0] for r in rows], np.int64)

        # TODO(synk): bucket frequencies by ntiles to avoid padding every row to the
        # global max (low-frequency rows stream some all-zero dc/wt columns as written).
        n_pad = 128 * int(math.ceil(int(ntiles_np.max()) / 128))
        w_pad = 8 * int(math.ceil(int(wband_np.max()) / 8))

        self.group = _pick_group(nfreq)
        nf_pad = self.group * int(math.ceil(nfreq / self.group))

        dc_band = np.zeros((nf_pad, 2 * w_pad, 2 * n_pad), np.float32)
        wt_all = np.zeros((nf_pad, n_pad, num_t_bins), np.float32)
        band_idx = np.zeros((nf_pad, w_pad), np.int32)
        ntiles_all = np.ones((nf_pad,), np.float32)
        valid = np.zeros((nf_pad, 1, n_pad), bool)
        pos = np.zeros((nf_pad,), np.float64)

        # Dc = [[Dr, Di], [-Di, Dr]] so that [fr_band | fi_band] @ Dc = [re | im]
        for i, (dr, di, nt, start) in enumerate(rows):
            wb = dr.shape[0]
            dc_band[i, :wb, :nt] = dr
            dc_band[i, :wb, n_pad:n_pad + nt] = di
            dc_band[i, w_pad:w_pad + wb, :nt] = -di
            dc_band[i, w_pad:w_pad + wb, n_pad:n_pad + nt] = dr
            wt_all[i, :nt, :] = build_1d(nt, num_t_bins)
            band_idx[i] = np.clip(start + np.arange(w_pad), 0, f_rfft - 1)
            ntiles_all[i] = float(nt)
            valid[i, 0, :nt] = True
            pos[i] = (nt - 1) * 0.5          # torch.quantile(0.5) linear interpolation

        m_freq = build_1d(nfreq, num_f_bins)                 # (nfreq, num_f_bins)
        mf_T = np.zeros((num_f_bins, nf_pad), np.float32)
        mf_T[:, :nfreq] = m_freq.T

        # bf16 streamed constants (single-pass MXU), f32 bookkeeping
        self.Dc = jnp.asarray(dc_band, dtype=jnp.bfloat16)
        self.Wt = jnp.asarray(wt_all, dtype=jnp.bfloat16)
        self.MfT = jnp.asarray(mf_T, dtype=jnp.bfloat16)
        self.band_idx = jnp.asarray(band_idx)
        self.med_lo = jnp.asarray(np.floor(pos).astype(np.int32))
        self.med_hi = jnp.asarray(np.ceil(pos).astype(np.int32))
        self.med_frac = jnp.asarray((pos - np.floor(pos)).astype(np.float32))
        self.valid_mask = jnp.asarray(valid)
        self.ntiles_f32 = jnp.asarray(ntiles_all)

    def __call__(self, X, norm="median"):
        X = jnp.asarray(X)
        if X.ndim > 3:
            raise ValueError("Input data has more than 3 dimensions")
        while X.ndim < 3:
            X = X[None]
        return _qtransform_forward(X, self.band_idx, self.Dc, self.Wt, self.MfT,
                                   self.valid_mask, self.med_lo, self.med_hi,
                                   self.med_frac, self.ntiles_f32,
                                   norm=norm, group=self.group)


# ----------------------------------------------------------------------------
if __name__ == "__main__":
    duration = 1.0
    sample_rate = 512.0
    B, C = 2, 2
    T = int(duration * sample_rate)
    spectrogram_shape = (64, 64)           # (num_f_bins, num_t_bins)

    key = jax.random.PRNGKey(0)
    X = jax.random.normal(key, (B, C, T), dtype=jnp.float32)

    qtransform = SingleQTransformPallas(
        duration=duration,
        sample_rate=sample_rate,
        spectrogram_shape=spectrogram_shape,
        q=12,
        mismatch=0.2,
        interpolation_method="bicubic",
    )

    out = qtransform(X, norm="median")
    out = jax.block_until_ready(out)

    assert out.shape == (B, C, spectrogram_shape[0], spectrogram_shape[1]), out.shape
    assert out.dtype == jnp.float32
    assert bool(jnp.all(jnp.isfinite(out)))
    print("KERNEL_OK")
</pallas_src>

<mosaic_0001>
module attributes {stable_mosaic.version = 11 : i64} {
  func.func @_energy_kernel(%arg0: i32, %arg1: memref<3x8x224xbf16, #tpu.memory_space<vmem>>, %arg2: memref<3x224x512xbf16, #tpu.memory_space<vmem>>, %arg3: memref<3x8x256xf32, #tpu.memory_space<vmem>>) attributes {dimension_semantics = [#tpu.dimension_semantics<parallel>], iteration_bounds = array<i64: 3>, scalar_prefetch = 0 : i64, scratch_operands = 0 : i64, tpu.core_type = #tpu.core_type<tc>, window_params = [{transform_indices = @transform_0, window_bounds = array<i64: 3, 8, 224>}, {transform_indices = @transform_1, window_bounds = array<i64: 3, 224, 512>}, {transform_indices = @transform_2, window_bounds = array<i64: 3, 8, 256>}]} {
    %c0 = arith.constant 0 : index
    %c0_0 = arith.constant 0 : index
    %c0_1 = arith.constant 0 : index
    %0 = vector.load %arg1[%c0, %c0_0, %c0_1] : memref<3x8x224xbf16, #tpu.memory_space<vmem>>, vector<3x8x224xbf16>
    %c0_2 = arith.constant 0 : index
    %c0_3 = arith.constant 0 : index
    %c0_4 = arith.constant 0 : index
    %1 = vector.load %arg2[%c0_2, %c0_3, %c0_4] : memref<3x224x512xbf16, #tpu.memory_space<vmem>>, vector<3x224x512xbf16>
    "tpu.trace_start"() <{level = 10 : i32, message = "gbw,gwn->gbn"}> : () -> ()
    %cst = arith.constant dense<0.000000e+00> : vector<3x8x512xf32>
    %2 = tpu.matmul %0, %1, %cst {dimension_numbers = #tpu.dot_dimension_numbers<[2], [1], [1], [2], [0, 0, 0, 1, 1, 2], [0], [0]>} : vector<3x8x224xbf16>, vector<3x224x512xbf16>, vector<3x8x512xf32> -> vector<3x8x512xf32>
    "tpu.trace_stop"() : () -> ()
    %3 = vector.extract_strided_slice %2 {offsets = [0, 0, 0], sizes = [3, 8, 256], strides = [1, 1, 1]} : vector<3x8x512xf32> to vector<3x8x256xf32>
    %4 = vector.extract_strided_slice %2 {offsets = [0, 0, 256], sizes = [3, 8, 256], strides = [1, 1, 1]} : vector<3x8x512xf32> to vector<3x8x256xf32>
    %5 = arith.mulf %3, %3 : vector<3x8x256xf32>
    %6 = arith.mulf %4, %4 : vector<3x8x256xf32>
    %7 = arith.addf %5, %6 : vector<3x8x256xf32>
    %c0_5 = arith.constant 0 : index
    %c0_6 = arith.constant 0 : index
    %c0_7 = arith.constant 0 : index
    %8 = vector.load %arg3[%c0_5, %c0_6, %c0_7] : memref<3x8x256xf32, #tpu.memory_space<vmem>>, vector<3x8x256xf32>
    tpu.vector_store %arg3[%c0_5, %c0_6, %c0_7], %7 {strides = array<i32>} : memref<3x8x256xf32, #tpu.memory_space<vmem>>, vector<3x8x256xf32>,
    return
  }
  func.func @transform_0(%arg0: i32) -> (i32, i32, i32) {
    %c0_i32 = arith.constant 0 : i32
    %c0_i32_0 = arith.constant 0 : i32
    %c0_i32_1 = arith.constant 0 : i32
    return %arg0, %c0_i32, %c0_i32_0 : i32, i32, i32
  }
  func.func @transform_1(%arg0: i32) -> (i32, i32, i32) {
    %c0_i32 = arith.constant 0 : i32
    %c0_i32_0 = arith.constant 0 : i32
    %c0_i32_1 = arith.constant 0 : i32
    return %arg0, %c0_i32, %c0_i32_0 : i32, i32, i32
  }
  func.func @transform_2(%arg0: i32) -> (i32, i32, i32) {
    %c0_i32 = arith.constant 0 : i32
    %c0_i32_0 = arith.constant 0 : i32
    %c0_i32_1 = arith.constant 0 : i32
    return %arg0, %c0_i32, %c0_i32_0 : i32, i32, i32
  }
}

module attributes {stable_mosaic.version = 11 : i64} {
  func.func @_tinterp_kernel(%arg0: i32, %arg1: memref<3x8x256xf32, #tpu.memory_space<vmem>>, %arg2: memref<3x8x1xf32, #tpu.memory_space<vmem>>, %arg3: memref<3x256x64xbf16, #tpu.memory_space<vmem>>, %arg4: memref<3x8x64xf32, #tpu.memory_space<vmem>>) attributes {dimension_semantics = [#tpu.dimension_semantics<parallel>], iteration_bounds = array<i64: 3>, scalar_prefetch = 0 : i64, scratch_operands = 0 : i64, tpu.core_type = #tpu.core_type<tc>, window_params = [{transform_indices = @transform_0, window_bounds = array<i64: 3, 8, 256>}, {transform_indices = @transform_1, window_bounds = array<i64: 3, 8, 1>}, {transform_indices = @transform_2, window_bounds = array<i64: 3, 256, 64>}, {transform_indices = @transform_3, window_bounds = array<i64: 3, 8, 64>}]} {
    %c0 = arith.constant 0 : index
    %c0_0 = arith.constant 0 : index
    %c0_1 = arith.constant 0 : index
    %0 = vector.load %arg1[%c0, %c0_0, %c0_1] : memref<3x8x256xf32, #tpu.memory_space<vmem>>, vector<3x8x256xf32>
    %c0_2 = arith.constant 0 : index
    %c0_3 = arith.constant 0 : index
    %c0_4 = arith.constant 0 : index
    %1 = vector.load %arg2[%c0_2, %c0_3, %c0_4] : memref<3x8x1xf32, #tpu.memory_space<vmem>>, vector<3x8x1xf32>
    %2 = vector.broadcast %1 : vector<3x8x1xf32> to vector<3x8x256xf32>
    %3 = arith.mulf %0, %2 : vector<3x8x256xf32>
    %4 = arith.truncf %3 : vector<3x8x256xf32> to vector<3x8x256xbf16>
    %c0_5 = arith.constant 0 : index
    %c0_6 = arith.constant 0 : index
    %c0_7 = arith.constant 0 : index
    %5 = vector.load %arg3[%c0_5, %c0_6, %c0_7] : memref<3x256x64xbf16, #tpu.memory_space<vmem>>, vector<3x256x64xbf16>
    "tpu.trace_start"() <{level = 10 : i32, message = "gbn,gnt->gbt"}> : () -> ()
    %cst = arith.constant dense<0.000000e+00> : vector<3x8x64xf32>
    %6 = tpu.matmul %4, %5, %cst {dimension_numbers = #tpu.dot_dimension_numbers<[2], [1], [1], [2], [0, 0, 0, 1, 1, 2], [0], [0]>} : vector<3x8x256xbf16>, vector<3x256x64xbf16>, vector<3x8x64xf32> -> vector<3x8x64xf32>
    "tpu.trace_stop"() : () -> ()
    %c0_8 = arith.constant 0 : index
    %c0_9 = arith.constant 0 : index
    %c0_10 = arith.constant 0 : index
    %7 = vector.load %arg4[%c0_8, %c0_9, %c0_10] : memref<3x8x64xf32, #tpu.memory_space<vmem>>, vector<3x8x64xf32>
    tpu.vector_store %arg4[%c0_8, %c0_9, %c0_10], %6 {strides = array<i32>} : memref<3x8x64xf32, #tpu.memory_space<vmem>>, vector<3x8x64xf32>,
    return
  }
  func.func @transform_0(%arg0: i32) -> (i32, i32, i32) {
    %c0_i32 = arith.constant 0 : i32
    %c0_i32_0 = arith.constant 0 : i32
    %c0_i32_1 = arith.constant 0 : i32
    return %arg0, %c0_i32, %c0_i32_0 : i32, i32, i32
  }
  func.func @transform_1(%arg0: i32) -> (i32, i32, i32) {
    %c0_i32 = arith.constant 0 : i32
    %c0_i32_0 = arith.constant 0 : i32
    %c0_i32_1 = arith.constant 0 : i32
    return %arg0, %c0_i32, %c0_i32_0 : i32, i32, i32
  }
  func.func @transform_2(%arg0: i32) -> (i32, i32, i32) {
    %c0_i32 = arith.constant 0 : i32
    %c0_i32_0 = arith.constant 0 : i32
    %c0_i32_1 = arith.constant 0 : i32
    return %arg0, %c0_i32, %c0_i32_0 : i32, i32, i32
  }
  func.func @transform_3(%arg0: i32) -> (i32, i32, i32) {
    %c0_i32 = arith.constant 0 : i32
    %c0_i32_0 = arith.constant 0 : i32
    %c0_i32_1 = arith.constant 0 : i32
    return %arg0, %c0_i32, %c0_i32_0 : i32, i32, i32
  }
}

module attributes {stable_mosaic.version = 11 : i64} {
  func.func @_finterp_kernel(%arg0: i32, %arg1: memref<64x9xbf16, #tpu.memory_space<vmem>>, %arg2: memref<9x512xbf16, #tpu.memory_space<vmem>>, %arg3: memref<64x512xf32, #tpu.memory_space<vmem>>) attributes {dimension_semantics = [#tpu.dimension_semantics<arbitrary>], iteration_bounds = array<i64: 1>, scalar_prefetch = 0 : i64, scratch_operands = 0 : i64, tpu.core_type = #tpu.core_type<tc>, window_params = [{pipeline_mode = #tpu.pipeline_mode<synchronous>, transform_indices = @transform_0, window_bounds = array<i64: 64, 9>}, {pipeline_mode = #tpu.pipeline_mode<synchronous>, transform_indices = @transform_1, window_bounds = array<i64: 9, 512>}, {pipeline_mode = #tpu.pipeline_mode<synchronous>, transform_indices = @transform_2, window_bounds = array<i64: 64, 512>}]} {
    %c0 = arith.constant 0 : index
    %c0_0 = arith.constant 0 : index
    %0 = vector.load %arg1[%c0, %c0_0] : memref<64x9xbf16, #tpu.memory_space<vmem>>, vector<64x9xbf16>
    %c0_1 = arith.constant 0 : index
    %c0_2 = arith.constant 0 : index
    %1 = vector.load %arg2[%c0_1, %c0_2] : memref<9x512xbf16, #tpu.memory_space<vmem>>, vector<9x512xbf16>
    %cst = arith.constant dense<0.000000e+00> : vector<64x512xf32>
    %2 = tpu.matmul %0, %1, %cst {dimension_numbers = #tpu.dot_dimension_numbers<[1], [0], [0], [1], [0, 0, 1, 1], [], []>} : vector<64x9xbf16>, vector<9x512xbf16>, vector<64x512xf32> -> vector<64x512xf32>
    %c0_3 = arith.constant 0 : index
    %c0_4 = arith.constant 0 : index
    %3 = vector.load %arg3[%c0_3, %c0_4] : memref<64x512xf32, #tpu.memory_space<vmem>>, vector<64x512xf32>
    tpu.vector_store %arg3[%c0_3, %c0_4], %2 {strides = array<i32>} : memref<64x512xf32, #tpu.memory_space<vmem>>, vector<64x512xf32>,
    return
  }
  func.func @transform_0(%arg0: i32) -> (i32, i32) {
    %c0_i32 = arith.constant 0 : i32
    %c0_i32_0 = arith.constant 0 : i32
    %c0_i32_1 = arith.constant 0 : i32
    return %c0_i32, %c0_i32_0 : i32, i32
  }
  func.func @transform_1(%arg0: i32) -> (i32, i32) {
    %c0_i32 = arith.constant 0 : i32
    %c0_i32_0 = arith.constant 0 : i32
    %c0_i32_1 = arith.constant 0 : i32
    return %c0_i32, %c0_i32_0 : i32, i32
  }
  func.func @transform_2(%arg0: i32) -> (i32, i32) {
    %c0_i32 = arith.constant 0 : i32
    %c0_i32_0 = arith.constant 0 : i32
    %c0_i32_1 = arith.constant 0 : i32
    return %c0_i32, %c0_i32_0 : i32, i32
  }
}

</mosaic_0001>

<llo_original>
// kernel: _qtransform_forward.3
$region0: #{_qtransform_forward.3}
  #allocation0 [shape = 'u32[]', space=smem, size = 0x4, offset = 0x4, fixed_abs, tag = 'smem constant byte address 0x4 - core index']
  #allocation1 [shape = 'u32[144,128]{1,0:T(1,128)}', space=vmem, size = 0x12000, scoped, tag = 'internal scratch']
  %s0 = inlined_call_operand.vmem [shape: bf16[9,8,224], index: 0, kind: input, shape index: {}]
  %s1 = inlined_call_operand.vmem [shape: bf16[9,224,512], index: 1, kind: input, shape index: {}]
  %s2 = inlined_call_operand.vmem [shape: f32[9,8,256], index: 2, kind: output, shape index: {}]
  %s3 = sld [smem:[#allocation0]]
  $region41: #{_qtransform_forward.3} parent=0
    _
  %s5 = ssub.s32 1, %s3
  %s6 = scalar_select 0, %s5, %s3
  loop: start=0, step=1, limit=5
  $region2: #{_qtransform_forward.3} parent=0 // loop_pre_header
    _
  $region3: #{_qtransform_forward.3} parent=0 // loop_header
    %s8 = sphi 0, %s12
    %p9 = scmp.ge.s32.totalorder %s8, 5
    %s18 = sphi 0, %s20
    %s21 = sphi 0, %s18
    %s22 = sphi 0, %s21
    %s38 = sphi 0, %s22
    %s44 = sphi 0, %s46
    %s47 = sphi 0, %s44
    %s48 = sphi 0, %s47
    %s64 = sphi 0, %s48
    %s70 = sphi 0, %s72
    %s73 = sphi 0, %s70
    %s74 = sphi 0, %s73
    %s90 = sphi 0, %s74
  $region4: #{_qtransform_forward.3} parent=0 // loop_header_branch
    %11 = sbr.rel (%p9) target = $region8
  $region5: #{_qtransform_forward.3} parent=0 // loop_body
    %s13 = ssub.s32 %s8, 1
    %s14 = ssub.s32 %s8, 2
    %s15 = sadd.s32 %s8, 1
    %s16 = ssub.s32 %s8, %s15
    %p17 = scmp.eq.s32.totalorder %s16, 0
    %s19 = sadd.s32 %s18, 1
    %s20 = scalar_select %p17, %s18, %s19
    %p23 = pneg %p17
    %p24 = scmp.eq.s32.totalorder %s8, 2
    %p25 = por %p23, %p24
    %p26 = scmp.ne.s32.totalorder %s18, %s21
    %p27 = scmp.eq.s32.totalorder %s8, 0
    %p28 = por %p26, %p27
    %p29 = scmp.ne.s32.totalorder %s18, %s21
    %p30 = scmp.eq.s32.totalorder %s13, 2
    %p31 = por %p29, %p30
    %p32 = scmp.ne.s32.totalorder %s21, %s22
    %p33 = scmp.eq.s32.totalorder %s13, 0
    %p34 = por %p32, %p33
    %p35 = scmp.ne.s32.totalorder %s21, %s22
    %p36 = scmp.eq.s32.totalorder %s14, 2
    %p37 = por %p35, %p36
    %p39 = scmp.ne.s32.totalorder %s22, %s38
    %p40 = scmp.eq.s32.totalorder %s14, 0
    %p41 = por %p39, %p40
    %s42 = ssub.s32 %s8, %s15
    %p43 = scmp.eq.s32.totalorder %s42, 0
    %s45 = sadd.s32 %s44, 1
    %s46 = scalar_select %p43, %s44, %s45
    %p49 = pneg %p43
    %p50 = scmp.eq.s32.totalorder %s8, 2
    %p51 = por %p49, %p50
    %p52 = scmp.ne.s32.totalorder %s44, %s47
    %p53 = scmp.eq.s32.totalorder %s8, 0
    %p54 = por %p52, %p53
    %p55 = scmp.ne.s32.totalorder %s44, %s47
    %p56 = scmp.eq.s32.totalorder %s13, 2
    %p57 = por %p55, %p56
    %p58 = scmp.ne.s32.totalorder %s47, %s48
    %p59 = scmp.eq.s32.totalorder %s13, 0
    %p60 = por %p58, %p59
    %p61 = scmp.ne.s32.totalorder %s47, %s48
    %p62 = scmp.eq.s32.totalorder %s14, 2
    %p63 = por %p61, %p62
    %p65 = scmp.ne.s32.totalorder %s48, %s64
    %p66 = scmp.eq.s32.totalorder %s14, 0
    %p67 = por %p65, %p66
    %s68 = ssub.s32 %s8, %s15
    %p69 = scmp.eq.s32.totalorder %s68, 0
    %s71 = sadd.s32 %s70, 1
    %s72 = scalar_select %p69, %s70, %s71
    %p75 = pneg %p69
    %p76 = scmp.eq.s32.totalorder %s8, 2
    %p77 = por %p75, %p76
    %p78 = scmp.ne.s32.totalorder %s70, %s73
    %p79 = scmp.eq.s32.totalorder %s8, 0
    %p80 = por %p78, %p79
    %p81 = scmp.ne.s32.totalorder %s70, %s73
    %p82 = scmp.eq.s32.totalorder %s13, 2
    %p83 = por %p81, %p82
    %p84 = scmp.ne.s32.totalorder %s73, %s74
    %p85 = scmp.eq.s32.totalorder %s13, 0
    %p86 = por %p84, %p85
    %p87 = scmp.ne.s32.totalorder %s73, %s74
    %p88 = scmp.eq.s32.totalorder %s14, 2
    %p89 = por %p87, %p88
    %p91 = scmp.ne.s32.totalorder %s74, %s90
    %p92 = scmp.eq.s32.totalorder %s14, 0
    %p93 = por %p91, %p92
    %p94 = scmp.le.s32.totalorder 1, %s8
    %p95 = scmp.lt.s32.totalorder %s8, 4
    %p96 = pnand %p94, %p95
    %p97 = pneg %p96
    // Predicated region
    $region9: #{_qtransform_forward.3} parent=5 // pred_check
      _
    $region10: #{_qtransform_forward.3} parent=5 // pred_check_branch
      %99 = sbr.rel (%p96) target = $region12
    $region11: #{_qtransform_forward.3} parent=5 // pred_region
      %s100 = ssub.s32 %s8, 1
    $region12: #{_qtransform_forward.3} parent=5 // pred_fallthru
      _
    %p101 = scmp.lt.s32.totalorder %s8, 3
    // Predicated region
    $region13: #{_qtransform_forward.3} parent=5 // pred_check
      %p102 = pneg %p101
    $region14: #{_qtransform_forward.3} parent=5 // pred_check_branch
      %104 = sbr.rel (%p102) target = $region16
    $region15: #{_qtransform_forward.3} parent=5 // pred_region
      // Predicated region
      $region17: #{_qtransform_forward.3} parent=15 // pred_check
        %p105 = pneg %p28
      $region18: #{_qtransform_forward.3} parent=15 // pred_check_branch
        %107 = sbr.rel (%p105) target = $region20
      $region19: #{_qtransform_forward.3} parent=15 // pred_region
        %s108 = smul.u32 3, %s8
        %p109 = scmp.lt.s32.totalorder %s108, 8
        %s110 = scalar_select %p109, %s108, 8
        %s111 = smul.addr %s110, 2
        %s112 = smul.addr %s111, 4
        %s113 = scalar_lea.vmem %s0, %s112
        %s114 = smul.u32 3, %s8
      $region20: #{_qtransform_forward.3} parent=15 // pred_fallthru
        _
      // Predicated region
      $region21: #{_qtransform_forward.3} parent=15 // pred_check
        %p115 = pneg %p54
      $region22: #{_qtransform_forward.3} parent=15 // pred_check_branch
        %117 = sbr.rel (%p115) target = $region24
      $region23: #{_qtransform_forward.3} parent=15 // pred_region
        %s118 = smul.u32 3, %s8
        %p119 = scmp.lt.s32.totalorder %s118, 8
        %s120 = scalar_select %p119, %s118, 8
        %s121 = smul.addr %s120, 112
        %s122 = smul.addr %s121, 4
        %s123 = scalar_lea.vmem %s1, %s122
        %s124 = smul.u32 3, %s8
      $region24: #{_qtransform_forward.3} parent=15 // pred_fallthru
        _
    $region16: #{_qtransform_forward.3} parent=5 // pred_fallthru
      _
    %p125 = scmp.le.s32.totalorder 1, %s8
    %p126 = scmp.lt.s32.totalorder %s8, 4
    %p127 = pnand %p125, %p126
    %p128 = pneg %p127
    // Predicated region
    $region25: #{_qtransform_forward.3} parent=5 // pred_check
      _
    $region26: #{_qtransform_forward.3} parent=5 // pred_check_branch
      %130 = sbr.rel (%p127) target = $region28
    $region27: #{_qtransform_forward.3} parent=5 // pred_region
      %s131 = ssub.s32 %s8, 1
      %s132 = smul.u32 3, %s13
      %p133 = scmp.lt.s32.totalorder %s132, 8
      %s134 = scalar_select %p133, %s132, 8
      %s135 = smul.addr %s134, 2
      %s136 = smul.addr %s135, 4
      %s137 = scalar_lea.vmem %s0, %s136
      %p138 = pneg %p34
      %p139 = pneg %p31
      %s140 = smul.u32 3, %s13
      %p141 = scmp.lt.s32.totalorder %s140, 8
      %s142 = scalar_select %p141, %s140, 8
      %s143 = smul.addr %s142, 112
      %s144 = smul.addr %s143, 4
      %s145 = scalar_lea.vmem %s1, %s144
      %p146 = pneg %p60
      %p147 = pneg %p57
      %p148 = pneg %p86
      %p149 = pneg %p83
      %s150 = smul.u32 3, %s13
      %p151 = scmp.lt.s32.totalorder %s150, 8
      %s152 = scalar_select %p151, %s150, 8
      %s153 = smul.addr %s152, 2
      %s154 = smul.addr %s153, 8
      %s155 = scalar_lea.vmem %s2, %s154
      %s156 = smul.u32 3, %s13
      %p157 = scmp.lt.s32.totalorder %s156, 8
      %s158 = scalar_select %p157, %s156, 8
      %s159 = smul.addr %s158, 2
      %s160 = smul.addr %s159, 4
      %s161 = scalar_lea.vmem %s0, %s160
      %s162 = smul.u32 3, %s13
      %s163 = smul.u32 3, %s13
      %p164 = scmp.lt.s32.totalorder %s163, 8
      %s165 = scalar_select %p164, %s163, 8
      %s166 = smul.addr %s165, 112
      %s167 = smul.addr %s166, 4
      %s168 = scalar_lea.vmem %s1, %s167
      %s169 = smul.u32 3, %s13
      %s170 = smul.u32 3, %s13
      %p171 = scmp.lt.s32.totalorder %s170, 8
      %s172 = scalar_select %p171, %s170, 8
      %s173 = smul.addr %s172, 2
      %s174 = smul.addr %s173, 8
      %s175 = scalar_lea.vmem %s2, %s174
      %s176 = smul.u32 3, %s13
      %v178 = vld [vmem:[%s161] sm:$0xff]
      %v179 = vld [vmem:[%s161 + $0x8] sm:$0xff]
      %v180 = vld [vmem:[%s161 + $0x10] sm:$0xff]
      %v181 = vld [vmem:[%s168] sm:$0xff]
      %v182 = vld [vmem:[%s168 + $0x8] sm:$0xff]
      %v183 = vld [vmem:[%s168 + $0x10] sm:$0xff]
      %v184 = vld [vmem:[%s168 + $0x18] sm:$0xff]
      %v185 = vld [vmem:[%s168 + $0x20] sm:$0xff]
      %v186 = vld [vmem:[%s168 + $0x28] sm:$0xff]
      %v187 = vld [vmem:[%s168 + $0x30] sm:$0xff]
      %v188 = vld [vmem:[%s168 + $0x38] sm:$0xff]
      %v189 = vld [vmem:[%s168 + $0x40] sm:$0xff]
      %v190 = vld [vmem:[%s168 + $0x48] sm:$0xff]
      %v191 = vld [vmem:[%s168 + $0x50] sm:$0xff]
      %v192 = vld [vmem:[%s168 + $0x58] sm:$0xff]
      %v193 = vld [vmem:[%s168 + $0x60] sm:$0xff]
      %v194 = vld [vmem:[%s168 + $0x68] sm:$0xff]
      %v195 = vld [vmem:[%s168 + $0x70] sm:$0xff]
      %v196 = vld [vmem:[%s168 + $0x78] sm:$0xff]
      %v197 = vld [vmem:[%s168 + $0x80] sm:$0xff]
      %v198 = vld [vmem:[%s168 + $0x88] sm:$0xff]
      %v199 = vld [vmem:[%s168 + $0x90] sm:$0xff]
      %v200 = vld [vmem:[%s168 + $0x98] sm:$0xff]
      %v201 = vld [vmem:[%s168 + $0xa0] sm:$0xff]
      %v202 = vld [vmem:[%s168 + $0xa8] sm:$0xff]
      %v203 = vld [vmem:[%s168 + $0xb0] sm:$0xff]
      %v204 = vld [vmem:[%s168 + $0xb8] sm:$0xff]
      %v205 = vld [vmem:[%s168 + $0xc0] sm:$0xff]
      %v206 = vld [vmem:[%s168 + $0xc8] sm:$0xff]
      %v207 = vld [vmem:[%s168 + $0xd0] sm:$0xff]
      %v208 = vld [vmem:[%s168 + $0xd8] sm:$0xff]
      %v209 = vld [vmem:[%s168 + $0xe0] sm:$0xff]
      %v210 = vld [vmem:[%s168 + $0xe8] sm:$0xff]
      %v211 = vld [vmem:[%s168 + $0xf0] sm:$0xff]
      %v212 = vld [vmem:[%s168 + $0xf8] sm:$0xff]
      %v213 = vld [vmem:[%s168 + $0x100] sm:$0xff]
      %v214 = vld [vmem:[%s168 + $0x108] sm:$0xff]
      %v215 = vld [vmem:[%s168 + $0x110] sm:$0xff]
      %v216 = vld [vmem:[%s168 + $0x118] sm:$0xff]
      %v217 = vld [vmem:[%s168 + $0x120] sm:$0xff]
      %v218 = vld [vmem:[%s168 + $0x128] sm:$0xff]
      %v219 = vld [vmem:[%s168 + $0x130] sm:$0xff]
      %v220 = vld [vmem:[%s168 + $0x138] sm:$0xff]
      %v221 = vld [vmem:[%s168 + $0x140] sm:$0xff]
      %v222 = vld [vmem:[%s168 + $0x148] sm:$0xff]
      %v223 = vld [vmem:[%s168 + $0x150] sm:$0xff]
      %v224 = vld [vmem:[%s168 + $0x158] sm:$0xff]
      %v225 = vld [vmem:[%s168 + $0x160] sm:$0xff]
      %v226 = vld [vmem:[%s168 + $0x168] sm:$0xff]
      %v227 = vld [vmem:[%s168 + $0x170] sm:$0xff]
      %v228 = vld [vmem:[%s168 + $0x178] sm:$0xff]
      %v229 = vld [vmem:[%s168 + $0x180] sm:$0xff]
      %v230 = vld [vmem:[%s168 + $0x188] sm:$0xff]
      %v231 = vld [vmem:[%s168 + $0x190] sm:$0xff]
      %v232 = vld [vmem:[%s168 + $0x198] sm:$0xff]
      %v233 = vld [vmem:[%s168 + $0x1a0] sm:$0xff]
      %v234 = vld [vmem:[%s168 + $0x1a8] sm:$0xff]
      %v235 = vld [vmem:[%s168 + $0x1b0] sm:$0xff]
      %v236 = vld [vmem:[%s168 + $0x1b8] sm:$0xff]
      %v237 = vld [vmem:[%s168 + $0x1c0] sm:$0xff]
      %v238 = vld [vmem:[%s168 + $0x1c8] sm:$0xff]
      %v239 = vld [vmem:[%s168 + $0x1d0] sm:$0xff]
      %v240 = vld [vmem:[%s168 + $0x1d8] sm:$0xff]
      %v241 = vld [vmem:[%s168 + $0x1e0] sm:$0xff]
      %v242 = vld [vmem:[%s168 + $0x1e8] sm:$0xff]
      %v243 = vld [vmem:[%s168 + $0x1f0] sm:$0xff]
      %v244 = vld [vmem:[%s168 + $0x1f8] sm:$0xff]
      %v245 = vld [vmem:[%s168 + $0x200] sm:$0xff]
      %v246 = vld [vmem:[%s168 + $0x208] sm:$0xff]
      %v247 = vld [vmem:[%s168 + $0x210] sm:$0xff]
      %v248 = vld [vmem:[%s168 + $0x218] sm:$0xff]
      %v249 = vld [vmem:[%s168 + $0x220] sm:$0xff]
      %v250 = vld [vmem:[%s168 + $0x228] sm:$0xff]
      %v251 = vld [vmem:[%s168 + $0x230] sm:$0xff]
      %v252 = vld [vmem:[%s168 + $0x238] sm:$0xff]
      %v253 = vld [vmem:[%s168 + $0x240] sm:$0xff]
      %v254 = vld [vmem:[%s168 + $0x248] sm:$0xff]
      %v255 = vld [vmem:[%s168 + $0x250] sm:$0xff]
      %v256 = vld [vmem:[%s168 + $0x258] sm:$0xff]
      %v257 = vld [vmem:[%s168 + $0x260] sm:$0xff]
      %v258 = vld [vmem:[%s168 + $0x268] sm:$0xff]
      %v259 = vld [vmem:[%s168 + $0x270] sm:$0xff]
      %v260 = vld [vmem:[%s168 + $0x278] sm:$0xff]
      %v261 = vld [vmem:[%s168 + $0x280] sm:$0xff]
      %v262 = vld [vmem:[%s168 + $0x288] sm:$0xff]
      %v263 = vld [vmem:[%s168 + $0x290] sm:$0xff]
      %v264 = vld [vmem:[%s168 + $0x298] sm:$0xff]
      %v265 = vld [vmem:[%s168 + $0x2a0] sm:$0xff]
      %v266 = vld [vmem:[%s168 + $0x2a8] sm:$0xff]
      %v267 = vld [vmem:[%s168 + $0x2b0] sm:$0xff]
      %v268 = vld [vmem:[%s168 + $0x2b8] sm:$0xff]
      %v269 = vld [vmem:[%s168 + $0x2c0] sm:$0xff]
      %v270 = vld [vmem:[%s168 + $0x2c8] sm:$0xff]
      %v271 = vld [vmem:[%s168 + $0x2d0] sm:$0xff]
      %v272 = vld [vmem:[%s168 + $0x2d8] sm:$0xff]
      %v273 = vld [vmem:[%s168 + $0x2e0] sm:$0xff]
      %v274 = vld [vmem:[%s168 + $0x2e8] sm:$0xff]
      %v275 = vld [vmem:[%s168 + $0x2f0] sm:$0xff]
      %v276 = vld [vmem:[%s168 + $0x2f8] sm:$0xff]
      %v277 = vld [vmem:[%s168 + $0x300] sm:$0xff]
      %v278 = vld [vmem:[%s168 + $0x308] sm:$0xff]
      %v279 = vld [vmem:[%s168 + $0x310] sm:$0xff]
      %v280 = vld [vmem:[%s168 + $0x318] sm:$0xff]
      %v281 = vld [vmem:[%s168 + $0x320] sm:$0xff]
      %v282 = vld [vmem:[%s168 + $0x328] sm:$0xff]
      %v283 = vld [vmem:[%s168 + $0x330] sm:$0xff]
      %v284 = vld [vmem:[%s168 + $0x338] sm:$0xff]
      %v285 = vld [vmem:[%s168 + $0x340] sm:$0xff]
      %v286 = vld [vmem:[%s168 + $0x348] sm:$0xff]
      %v287 = vld [vmem:[%s168 + $0x350] sm:$0xff]
      %v288 = vld [vmem:[%s168 + $0x358] sm:$0xff]
      %v289 = vld [vmem:[%s168 + $0x360] sm:$0xff]
      %v290 = vld [vmem:[%s168 + $0x368] sm:$0xff]
      %v291 = vld [vmem:[%s168 + $0x370] sm:$0xff]
      %v292 = vld [vmem:[%s168 + $0x378] sm:$0xff]
      %v293 = vld [vmem:[%s168 + $0x380] sm:$0xff]
      %v294 = vld [vmem:[%s168 + $0x388] sm:$0xff]
      %v295 = vld [vmem:[%s168 + $0x390] sm:$0xff]
      %v296 = vld [vmem:[%s168 + $0x398] sm:$0xff]
      %v297 = vld [vmem:[%s168 + $0x3a0] sm:$0xff]
      %v298 = vld [vmem:[%s168 + $0x3a8] sm:$0xff]
      %v299 = vld [vmem:[%s168 + $0x3b0] sm:$0xff]
      %v300 = vld [vmem:[%s168 + $0x3b8] sm:$0xff]
      %v301 = vld [vmem:[%s168 + $0x3c0] sm:$0xff]
      %v302 = vld [vmem:[%s168 + $0x3c8] sm:$0xff]
      %v303 = vld [vmem:[%s168 + $0x3d0] sm:$0xff]
      %v304 = vld [vmem:[%s168 + $0x3d8] sm:$0xff]
      %v305 = vld [vmem:[%s168 + $0x3e0] sm:$0xff]
      %v306 = vld [vmem:[%s168 + $0x3e8] sm:$0xff]
      %v307 = vld [vmem:[%s168 + $0x3f0] sm:$0xff]
      %v308 = vld [vmem:[%s168 + $0x3f8] sm:$0xff]
      %v309 = vld [vmem:[%s168 + $0x400] sm:$0xff]
      %v310 = vld [vmem:[%s168 + $0x408] sm:$0xff]
      %v311 = vld [vmem:[%s168 + $0x410] sm:$0xff]
      %v312 = vld [vmem:[%s168 + $0x418] sm:$0xff]
      %v313 = vld [vmem:[%s168 + $0x420] sm:$0xff]
      %v314 = vld [vmem:[%s168 + $0x428] sm:$0xff]
      %v315 = vld [vmem:[%s168 + $0x430] sm:$0xff]
      %v316 = vld [vmem:[%s168 + $0x438] sm:$0xff]
      %v317 = vld [vmem:[%s168 + $0x440] sm:$0xff]
      %v318 = vld [vmem:[%s168 + $0x448] sm:$0xff]
      %v319 = vld [vmem:[%s168 + $0x450] sm:$0xff]
      %v320 = vld [vmem:[%s168 + $0x458] sm:$0xff]
      %v321 = vld [vmem:[%s168 + $0x460] sm:$0xff]
      %v322 = vld [vmem:[%s168 + $0x468] sm:$0xff]
      %v323 = vld [vmem:[%s168 + $0x470] sm:$0xff]
      %v324 = vld [vmem:[%s168 + $0x478] sm:$0xff]
      %v325 = vld [vmem:[%s168 + $0x480] sm:$0xff]
      %v326 = vld [vmem:[%s168 + $0x488] sm:$0xff]
      %v327 = vld [vmem:[%s168 + $0x490] sm:$0xff]
      %v328 = vld [vmem:[%s168 + $0x498] sm:$0xff]
      %v329 = vld [vmem:[%s168 + $0x4a0] sm:$0xff]
      %v330 = vld [vmem:[%s168 + $0x4a8] sm:$0xff]
      %v331 = vld [vmem:[%s168 + $0x4b0] sm:$0xff]
      %v332 = vld [vmem:[%s168 + $0x4b8] sm:$0xff]
      %v333 = vld [vmem:[%s168 + $0x4c0] sm:$0xff]
      %v334 = vld [vmem:[%s168 + $0x4c8] sm:$0xff]
      %v335 = vld [vmem:[%s168 + $0x4d0] sm:$0xff]
      %v336 = vld [vmem:[%s168 + $0x4d8] sm:$0xff]
      %v337 = vld [vmem:[%s168 + $0x4e0] sm:$0xff]
      %v338 = vld [vmem:[%s168 + $0x4e8] sm:$0xff]
      %v339 = vld [vmem:[%s168 + $0x4f0] sm:$0xff]
      %v340 = vld [vmem:[%s168 + $0x4f8] sm:$0xff]
      %v341 = vld [vmem:[%s168 + $0x500] sm:$0xff]
      %v342 = vld [vmem:[%s168 + $0x508] sm:$0xff]
      %v343 = vld [vmem:[%s168 + $0x510] sm:$0xff]
      %v344 = vld [vmem:[%s168 + $0x518] sm:$0xff]
      %v345 = vld [vmem:[%s168 + $0x520] sm:$0xff]
      %v346 = vld [vmem:[%s168 + $0x528] sm:$0xff]
      %v347 = vld [vmem:[%s168 + $0x530] sm:$0xff]
      %v348 = vld [vmem:[%s168 + $0x538] sm:$0xff]
      %v350 = vunpack.c.l.b16 %v178
      %v351 = vunpack.c.h.b16 %v178
      %v352 = vpack.c.b16 %v350, %v350
      %v353 = vpack.c.b16 %v351, %v351
      %v411 = vunpack.c.l.b16 %v181
      %v412 = vunpack.c.h.b16 %v181
      %v413 = vunpack.c.l.b16 %v182
      %v414 = vunpack.c.h.b16 %v182
      %v415 = vunpack.c.l.b16 %v183
      %v416 = vunpack.c.h.b16 %v183
      %v417 = vunpack.c.l.b16 %v184
      %v418 = vunpack.c.h.b16 %v184
      %v419 = vunpack.c.l.b16 %v185
      %v420 = vunpack.c.h.b16 %v185
      %v421 = vunpack.c.l.b16 %v186
      %v422 = vunpack.c.h.b16 %v186
      %v423 = vunpack.c.l.b16 %v187
      %v424 = vunpack.c.h.b16 %v187
      %v425 = vunpack.c.l.b16 %v188
      %v426 = vunpack.c.h.b16 %v188
      %v427 = vunpack.c.l.b16 %v189
      %v428 = vunpack.c.h.b16 %v189
      %v429 = vunpack.c.l.b16 %v190
      %v430 = vunpack.c.h.b16 %v190
      %v431 = vunpack.c.l.b16 %v191
      %v432 = vunpack.c.h.b16 %v191
      %v433 = vunpack.c.l.b16 %v192
      %v434 = vunpack.c.h.b16 %v192
      %v435 = vunpack.c.l.b16 %v193
      %v436 = vunpack.c.h.b16 %v193
      %v437 = vunpack.c.l.b16 %v194
      %v438 = vunpack.c.h.b16 %v194
      %v439 = vunpack.c.l.b16 %v195
      %v440 = vunpack.c.h.b16 %v195
      %v441 = vunpack.c.l.b16 %v196
      %v442 = vunpack.c.h.b16 %v196
      %v443 = vunpack.c.l.b16 %v197
      %v444 = vunpack.c.h.b16 %v197
      %v445 = vunpack.c.l.b16 %v198
      %v446 = vunpack.c.h.b16 %v198
      %v447 = vunpack.c.l.b16 %v199
      %v448 = vunpack.c.h.b16 %v199
      %v449 = vunpack.c.l.b16 %v200
      %v450 = vunpack.c.h.b16 %v200
      %v451 = vunpack.c.l.b16 %v201
      %v452 = vunpack.c.h.b16 %v201
      %v453 = vunpack.c.l.b16 %v202
      %v454 = vunpack.c.h.b16 %v202
      %v455 = vunpack.c.l.b16 %v203
      %v456 = vunpack.c.h.b16 %v203
      %v457 = vunpack.c.l.b16 %v204
      %v458 = vunpack.c.h.b16 %v204
      %v459 = vunpack.c.l.b16 %v205
      %v460 = vunpack.c.h.b16 %v205
      %v461 = vunpack.c.l.b16 %v206
      %v462 = vunpack.c.h.b16 %v206
      %v463 = vunpack.c.l.b16 %v207
      %v464 = vunpack.c.h.b16 %v207
      %v465 = vunpack.c.l.b16 %v208
      %v466 = vunpack.c.h.b16 %v208
      %v467 = vunpack.c.l.b16 %v209
      %v468 = vunpack.c.h.b16 %v209
      %v469 = vunpack.c.l.b16 %v210
      %v470 = vunpack.c.h.b16 %v210
      %v471 = vunpack.c.l.b16 %v211
      %v472 = vunpack.c.h.b16 %v211
      %v473 = vunpack.c.l.b16 %v212
      %v474 = vunpack.c.h.b16 %v212
      %v475 = vunpack.c.l.b16 %v213
      %v476 = vunpack.c.h.b16 %v213
      %v477 = vunpack.c.l.b16 %v214
      %v478 = vunpack.c.h.b16 %v214
      %v479 = vunpack.c.l.b16 %v215
      %v480 = vunpack.c.h.b16 %v215
      %v481 = vunpack.c.l.b16 %v216
      %v482 = vunpack.c.h.b16 %v216
      %v483 = vunpack.c.l.b16 %v217
      %v484 = vunpack.c.h.b16 %v217
      %v485 = vunpack.c.l.b16 %v218
      %v486 = vunpack.c.h.b16 %v218
      %v487 = vunpack.c.l.b16 %v219
      %v488 = vunpack.c.h.b16 %v219
      %v489 = vunpack.c.l.b16 %v220
      %v490 = vunpack.c.h.b16 %v220
      %v491 = vunpack.c.l.b16 %v221
      %v492 = vunpack.c.h.b16 %v221
      %v493 = vunpack.c.l.b16 %v222
      %v494 = vunpack.c.h.b16 %v222
      %v495 = vunpack.c.l.b16 %v223
      %v496 = vunpack.c.h.b16 %v223
      %v497 = vunpack.c.l.b16 %v224
      %v498 = vunpack.c.h.b16 %v224
      %v499 = vunpack.c.l.b16 %v225
      %v500 = vunpack.c.h.b16 %v225
      %v501 = vunpack.c.l.b16 %v226
      %v502 = vunpack.c.h.b16 %v226
      %v503 = vunpack.c.l.b16 %v227
      %v504 = vunpack.c.h.b16 %v227
      %v505 = vunpack.c.l.b16 %v228
      %v506 = vunpack.c.h.b16 %v228
      %v507 = vunpack.c.l.b16 %v229
      %v508 = vunpack.c.h.b16 %v229
      %v509 = vunpack.c.l.b16 %v230
      %v510 = vunpack.c.h.b16 %v230
      %v511 = vunpack.c.l.b16 %v231
      %v512 = vunpack.c.h.b16 %v231
      %v513 = vunpack.c.l.b16 %v232
      %v514 = vunpack.c.h.b16 %v232
      %v515 = vunpack.c.l.b16 %v233
      %v516 = vunpack.c.h.b16 %v233
      %v517 = vunpack.c.l.b16 %v234
      %v518 = vunpack.c.h.b16 %v234
      %v519 = vunpack.c.l.b16 %v235
      %v520 = vunpack.c.h.b16 %v235
      %v521 = vunpack.c.l.b16 %v236
      %v522 = vunpack.c.h.b16 %v236
      %v523 = vpack.c.b16 %v415, %v411
      %v524 = vpack.c.b16 %v416, %v412
      %v525 = vpack.c.b16 %v417, %v413
      %v526 = vpack.c.b16 %v418, %v414
      %v527 = vpack.c.b16 %v423, %v419
      %v528 = vpack.c.b16 %v424, %v420
      %v529 = vpack.c.b16 %v425, %v421
      %v530 = vpack.c.b16 %v426, %v422
      %v531 = vpack.c.b16 %v431, %v427
      %v532 = vpack.c.b16 %v432, %v428
      %v533 = vpack.c.b16 %v433, %v429
      %v534 = vpack.c.b16 %v434, %v430
      %v535 = vpack.c.b16 %v439, %v435
      %v536 = vpack.c.b16 %v440, %v436
      %v537 = vpack.c.b16 %v441, %v437
      %v538 = vpack.c.b16 %v442, %v438
      %v539 = vpack.c.b16 %v447, %v443
      %v540 = vpack.c.b16 %v448, %v444
      %v541 = vpack.c.b16 %v449, %v445
      %v542 = vpack.c.b16 %v450, %v446
      %v543 = vpack.c.b16 %v455, %v451
      %v544 = vpack.c.b16 %v456, %v452
      %v545 = vpack.c.b16 %v457, %v453
      %v546 = vpack.c.b16 %v458, %v454
      %v547 = vpack.c.b16 %v463, %v459
      %v548 = vpack.c.b16 %v464, %v460
      %v549 = vpack.c.b16 %v465, %v461
      %v550 = vpack.c.b16 %v466, %v462
      %v551 = vpack.c.b16 %v471, %v467
      %v552 = vpack.c.b16 %v472, %v468
      %v553 = vpack.c.b16 %v473, %v469
      %v554 = vpack.c.b16 %v474, %v470
      %v555 = vpack.c.b16 %v479, %v475
      %v556 = vpack.c.b16 %v480, %v476
      %v557 = vpack.c.b16 %v481, %v477
      %v558 = vpack.c.b16 %v482, %v478
      %v559 = vpack.c.b16 %v487, %v483
      %v560 = vpack.c.b16 %v488, %v484
      %v561 = vpack.c.b16 %v489, %v485
      %v562 = vpack.c.b16 %v490, %v486
      %v563 = vpack.c.b16 %v495, %v491
      %v564 = vpack.c.b16 %v496, %v492
      %v565 = vpack.c.b16 %v497, %v493
      %v566 = vpack.c.b16 %v498, %v494
      %v567 = vpack.c.b16 %v503, %v499
      %v568 = vpack.c.b16 %v504, %v500
      %v569 = vpack.c.b16 %v505, %v501
      %v570 = vpack.c.b16 %v506, %v502
      %v571 = vpack.c.b16 %v511, %v507
      %v572 = vpack.c.b16 %v512, %v508
      %v573 = vpack.c.b16 %v513, %v509
      %v574 = vpack.c.b16 %v514, %v510
      %v575 = vpack.c.b16 %v519, %v515
      %v576 = vpack.c.b16 %v520, %v516
      %v577 = vpack.c.b16 %v521, %v517
      %v578 = vpack.c.b16 %v522, %v518
      %vm635 = vcmask 785408
      %v637 = vsel %vm635, %v353, 0
      %639 = vmatprep.subr.bf16.mxu0 %v524
      %640 = vmatpush1.bf16.msra.mxu0 %v523
      %641 = vmatprep.subr.bf16.mxu0 %v528
      %642 = vmatpush1.bf16.msra.mxu0 %v527
      %643 = vmatprep.subr.bf16.mxu0 %v532
      %644 = vmatpush1.bf16.msra.mxu0 %v531
      %645 = vmatprep.subr.bf16.mxu0 %v536
      %646 = vmatpush1.bf16.msra.mxu0 %v535
      %647 = vmatprep.subr.bf16.mxu0 %v540
      %648 = vmatpush1.bf16.msra.mxu0 %v539
      %649 = vmatprep.subr.bf16.mxu0 %v544
      %650 = vmatpush1.bf16.msra.mxu0 %v543
      %651 = vmatprep.subr.bf16.mxu0 %v548
      %652 = vmatpush1.bf16.msra.mxu0 %v547
      %653 = vmatprep.subr.bf16.mxu0 %v552
      %654 = vmatpush1.bf16.msra.mxu0 %v551
      %655 = vmatprep.subr.bf16.mxu0 %v556
      %656 = vmatpush1.bf16.msra.mxu0 %v555
      %657 = vmatprep.subr.bf16.mxu0 %v560
      %658 = vmatpush1.bf16.msra.mxu0 %v559
      %659 = vmatprep.subr.bf16.mxu0 %v564
      %660 = vmatpush1.bf16.msra.mxu0 %v563
      %661 = vmatprep.subr.bf16.mxu0 %v568
      %662 = vmatpush1.bf16.msra.mxu0 %v567
      %663 = vmatprep.subr.bf16.mxu0 %v572
      %664 = vmatpush1.bf16.msra.mxu0 %v571
      %665 = vmatprep.subr.bf16.mxu0 %v576
      %666 = vmatpush1.bf16.msra.mxu0 %v575
      %667 = vmatprep.subr.bf16.mxu0 0
      %668 = vmatpush1.bf16.msra.mxu0 0
      %669 = vmatprep.subr.bf16.mxu0 0
      %670 = vmatpush1.bf16.msra.mxu0 0
      %671 = vmatprep.mubr.bf16.mxu0 %v637
      %672 = vmatmul.mubr.bf16.gmra.mrb[0].mxu0 %v352
      %v673 = vpop.f32.mrb[0].mxu0
      %v674 = vadd.f32 0.0, %v673
      %v675 = vpop.f32.mrb[0].mxu0
      %v676 = vadd.f32 0.0, %v675
      %v677 = vpop.f32.mrb[0].mxu0
      %v678 = vpop.f32.mrb[0].mxu0
      %679 = vdwg.mxu0
      %680 = vmatprep.subr.bf16.mxu0 %v526
      %681 = vmatpush1.bf16.msra.mxu0 %v525
      %682 = vmatprep.subr.bf16.mxu0 %v530
      %683 = vmatpush1.bf16.msra.mxu0 %v529
      %684 = vmatprep.subr.bf16.mxu0 %v534
      %685 = vmatpush1.bf16.msra.mxu0 %v533
      %686 = vmatprep.subr.bf16.mxu0 %v538
      %687 = vmatpush1.bf16.msra.mxu0 %v537
      %688 = vmatprep.subr.bf16.mxu0 %v542
      %689 = vmatpush1.bf16.msra.mxu0 %v541
      %690 = vmatprep.subr.bf16.mxu0 %v546
      %691 = vmatpush1.bf16.msra.mxu0 %v545
      %692 = vmatprep.subr.bf16.mxu0 %v550
      %693 = vmatpush1.bf16.msra.mxu0 %v549
      %694 = vmatprep.subr.bf16.mxu0 %v554
      %695 = vmatpush1.bf16.msra.mxu0 %v553
      %696 = vmatprep.subr.bf16.mxu0 %v558
      %697 = vmatpush1.bf16.msra.mxu0 %v557
      %698 = vmatprep.subr.bf16.mxu0 %v562
      %699 = vmatpush1.bf16.msra.mxu0 %v561
      %700 = vmatprep.subr.bf16.mxu0 %v566
      %701 = vmatpush1.bf16.msra.mxu0 %v565
      %702 = vmatprep.subr.bf16.mxu0 %v570
      %703 = vmatpush1.bf16.msra.mxu0 %v569
      %704 = vmatprep.subr.bf16.mxu0 %v574
      %705 = vmatpush1.bf16.msra.mxu0 %v573
      %706 = vmatprep.subr.bf16.mxu0 %v578
      %707 = vmatpush1.bf16.msra.mxu0 %v577
      %708 = vmatprep.subr.bf16.mxu0 0
      %709 = vmatpush1.bf16.msra.mxu0 0
      %710 = vmatprep.subr.bf16.mxu0 0
      %711 = vmatpush1.bf16.msra.mxu0 0
      %712 = vmatprep.mubr.bf16.mxu0 %v637
      %713 = vmatmul.mubr.bf16.gmra.mrb[0].mxu0 %v352
      %v714 = vpop.f32.mrb[0].mxu0
      %v715 = vadd.f32 0.0, %v714
      %v716 = vpop.f32.mrb[0].mxu0
      %v717 = vadd.f32 0.0, %v716
      %v718 = vpop.f32.mrb[0].mxu0
      %v719 = vpop.f32.mrb[0].mxu0
      %720 = vdwg.mxu0
      %v722 = vunpack.c.l.b16 %v179
      %v723 = vunpack.c.h.b16 %v179
      %v724 = vpack.c.b16 %v722, %v722
      %v725 = vpack.c.b16 %v723, %v723
      %v783 = vunpack.c.l.b16 %v237
      %v784 = vunpack.c.h.b16 %v237
      %v785 = vunpack.c.l.b16 %v238
      %v786 = vunpack.c.h.b16 %v238
      %v787 = vunpack.c.l.b16 %v239
      %v788 = vunpack.c.h.b16 %v239
      %v789 = vunpack.c.l.b16 %v240
      %v790 = vunpack.c.h.b16 %v240
      %v791 = vunpack.c.l.b16 %v241
      %v792 = vunpack.c.h.b16 %v241
      %v793 = vunpack.c.l.b16 %v242
      %v794 = vunpack.c.h.b16 %v242
      %v795 = vunpack.c.l.b16 %v243
      %v796 = vunpack.c.h.b16 %v243
      %v797 = vunpack.c.l.b16 %v244
      %v798 = vunpack.c.h.b16 %v244
      %v799 = vunpack.c.l.b16 %v245
      %v800 = vunpack.c.h.b16 %v245
      %v801 = vunpack.c.l.b16 %v246
      %v802 = vunpack.c.h.b16 %v246
      %v803 = vunpack.c.l.b16 %v247
      %v804 = vunpack.c.h.b16 %v247
      %v805 = vunpack.c.l.b16 %v248
      %v806 = vunpack.c.h.b16 %v248
      %v807 = vunpack.c.l.b16 %v249
      %v808 = vunpack.c.h.b16 %v249
      %v809 = vunpack.c.l.b16 %v250
      %v810 = vunpack.c.h.b16 %v250
      %v811 = vunpack.c.l.b16 %v251
      %v812 = vunpack.c.h.b16 %v251
      %v813 = vunpack.c.l.b16 %v252
      %v814 = vunpack.c.h.b16 %v252
      %v815 = vunpack.c.l.b16 %v253
      %v816 = vunpack.c.h.b16 %v253
      %v817 = vunpack.c.l.b16 %v254
      %v818 = vunpack.c.h.b16 %v254
      %v819 = vunpack.c.l.b16 %v255
      %v820 = vunpack.c.h.b16 %v255
      %v821 = vunpack.c.l.b16 %v256
      %v822 = vunpack.c.h.b16 %v256
      %v823 = vunpack.c.l.b16 %v257
      %v824 = vunpack.c.h.b16 %v257
      %v825 = vunpack.c.l.b16 %v258
      %v826 = vunpack.c.h.b16 %v258
      %v827 = vunpack.c.l.b16 %v259
      %v828 = vunpack.c.h.b16 %v259
      %v829 = vunpack.c.l.b16 %v260
      %v830 = vunpack.c.h.b16 %v260
      %v831 = vunpack.c.l.b16 %v261
      %v832 = vunpack.c.h.b16 %v261
      %v833 = vunpack.c.l.b16 %v262
      %v834 = vunpack.c.h.b16 %v262
      %v835 = vunpack.c.l.b16 %v263
      %v836 = vunpack.c.h.b16 %v263
      %v837 = vunpack.c.l.b16 %v264
      %v838 = vunpack.c.h.b16 %v264
      %v839 = vunpack.c.l.b16 %v265
      %v840 = vunpack.c.h.b16 %v265
      %v841 = vunpack.c.l.b16 %v266
      %v842 = vunpack.c.h.b16 %v266
      %v843 = vunpack.c.l.b16 %v267
      %v844 = vunpack.c.h.b16 %v267
      %v845 = vunpack.c.l.b16 %v268
      %v846 = vunpack.c.h.b16 %v268
      %v847 = vunpack.c.l.b16 %v269
      %v848 = vunpack.c.h.b16 %v269
      %v849 = vunpack.c.l.b16 %v270
      %v850 = vunpack.c.h.b16 %v270
      %v851 = vunpack.c.l.b16 %v271
      %v852 = vunpack.c.h.b16 %v271
      %v853 = vunpack.c.l.b16 %v272
      %v854 = vunpack.c.h.b16 %v272
      %v855 = vunpack.c.l.b16 %v273
      %v856 = vunpack.c.h.b16 %v273
      %v857 = vunpack.c.l.b16 %v274
      %v858 = vunpack.c.h.b16 %v274
      %v859 = vunpack.c.l.b16 %v275
      %v860 = vunpack.c.h.b16 %v275
      %v861 = vunpack.c.l.b16 %v276
      %v862 = vunpack.c.h.b16 %v276
      %v863 = vunpack.c.l.b16 %v277
      %v864 = vunpack.c.h.b16 %v277
      %v865 = vunpack.c.l.b16 %v278
      %v866 = vunpack.c.h.b16 %v278
      %v867 = vunpack.c.l.b16 %v279
      %v868 = vunpack.c.h.b16 %v279
      %v869 = vunpack.c.l.b16 %v280
      %v870 = vunpack.c.h.b16 %v280
      %v871 = vunpack.c.l.b16 %v281
      %v872 = vunpack.c.h.b16 %v281
      %v873 = vunpack.c.l.b16 %v282
      %v874 = vunpack.c.h.b16 %v282
      %v875 = vunpack.c.l.b16 %v283
      %v876 = vunpack.c.h.b16 %v283
      %v877 = vunpack.c.l.b16 %v284
      %v878 = vunpack.c.h.b16 %v284
      %v879 = vunpack.c.l.b16 %v285
      %v880 = vunpack.c.h.b16 %v285
      %v881 = vunpack.c.l.b16 %v286
      %v882 = vunpack.c.h.b16 %v286
      %v883 = vunpack.c.l.b16 %v287
      %v884 = vunpack.c.h.b16 %v287
      %v885 = vunpack.c.l.b16 %v288
      %v886 = vunpack.c.h.b16 %v288
      %v887 = vunpack.c.l.b16 %v289
      %v888 = vunpack.c.h.b16 %v289
      %v889 = vunpack.c.l.b16 %v290
      %v890 = vunpack.c.h.b16 %v290
      %v891 = vunpack.c.l.b16 %v291
      %v892 = vunpack.c.h.b16 %v291
      %v893 = vunpack.c.l.b16 %v292
      %v894 = vunpack.c.h.b16 %v292
      %v895 = vpack.c.b16 %v787, %v783
      %v896 = vpack.c.b16 %v788, %v784
      %v897 = vpack.c.b16 %v789, %v785
      %v898 = vpack.c.b16 %v790, %v786
      %v899 = vpack.c.b16 %v795, %v791
      %v900 = vpack.c.b16 %v796, %v792
      %v901 = vpack.c.b16 %v797, %v793
      %v902 = vpack.c.b16 %v798, %v794
      %v903 = vpack.c.b16 %v803, %v799
      %v904 = vpack.c.b16 %v804, %v800
      %v905 = vpack.c.b16 %v805, %v801
      %v906 = vpack.c.b16 %v806, %v802
      %v907 = vpack.c.b16 %v811, %v807
      %v908 = vpack.c.b16 %v812, %v808
      %v909 = vpack.c.b16 %v813, %v809
      %v910 = vpack.c.b16 %v814, %v810
      %v911 = vpack.c.b16 %v819, %v815
      %v912 = vpack.c.b16 %v820, %v816
      %v913 = vpack.c.b16 %v821, %v817
      %v914 = vpack.c.b16 %v822, %v818
      %v915 = vpack.c.b16 %v827, %v823
      %v916 = vpack.c.b16 %v828, %v824
      %v917 = vpack.c.b16 %v829, %v825
      %v918 = vpack.c.b16 %v830, %v826
      %v919 = vpack.c.b16 %v835, %v831
      %v920 = vpack.c.b16 %v836, %v832
      %v921 = vpack.c.b16 %v837, %v833
      %v922 = vpack.c.b16 %v838, %v834
      %v923 = vpack.c.b16 %v843, %v839
      %v924 = vpack.c.b16 %v844, %v840
      %v925 = vpack.c.b16 %v845, %v841
      %v926 = vpack.c.b16 %v846, %v842
      %v927 = vpack.c.b16 %v851, %v847
      %v928 = vpack.c.b16 %v852, %v848
      %v929 = vpack.c.b16 %v853, %v849
      %v930 = vpack.c.b16 %v854, %v850
      %v931 = vpack.c.b16 %v859, %v855
      %v932 = vpack.c.b16 %v860, %v856
      %v933 = vpack.c.b16 %v861, %v857
      %v934 = vpack.c.b16 %v862, %v858
      %v935 = vpack.c.b16 %v867, %v863
      %v936 = vpack.c.b16 %v868, %v864
      %v937 = vpack.c.b16 %v869, %v865
      %v938 = vpack.c.b16 %v870, %v866
      %v939 = vpack.c.b16 %v875, %v871
      %v940 = vpack.c.b16 %v876, %v872
      %v941 = vpack.c.b16 %v877, %v873
      %v942 = vpack.c.b16 %v878, %v874
      %v943 = vpack.c.b16 %v883, %v879
      %v944 = vpack.c.b16 %v884, %v880
      %v945 = vpack.c.b16 %v885, %v881
      %v946 = vpack.c.b16 %v886, %v882
      %v947 = vpack.c.b16 %v891, %v887
      %v948 = vpack.c.b16 %v892, %v888
      %v949 = vpack.c.b16 %v893, %v889
      %v950 = vpack.c.b16 %v894, %v890
      %v1008 = vsel %vm635, %v725, 0
      %1010 = vmatprep.subr.bf16.mxu0 %v896
      %1011 = vmatpush1.bf16.msra.mxu0 %v895
      %1012 = vmatprep.subr.bf16.mxu0 %v900
      %1013 = vmatpush1.bf16.msra.mxu0 %v899
      %1014 = vmatprep.subr.bf16.mxu0 %v904
      %1015 = vmatpush1.bf16.msra.mxu0 %v903
      %1016 = vmatprep.subr.bf16.mxu0 %v908
      %1017 = vmatpush1.bf16.msra.mxu0 %v907
      %1018 = vmatprep.subr.bf16.mxu0 %v912
      %1019 = vmatpush1.bf16.msra.mxu0 %v911
      %1020 = vmatprep.subr.bf16.mxu0 %v916
      %1021 = vmatpush1.bf16.msra.mxu0 %v915
      %1022 = vmatprep.subr.bf16.mxu0 %v920
      %1023 = vmatpush1.bf16.msra.mxu0 %v919
      %1024 = vmatprep.subr.bf16.mxu0 %v924
      %1025 = vmatpush1.bf16.msra.mxu0 %v923
      %1026 = vmatprep.subr.bf16.mxu0 %v928
      %1027 = vmatpush1.bf16.msra.mxu0 %v927
      %1028 = vmatprep.subr.bf16.mxu0 %v932
      %1029 = vmatpush1.bf16.msra.mxu0 %v931
      %1030 = vmatprep.subr.bf16.mxu0 %v936
      %1031 = vmatpush1.bf16.msra.mxu0 %v935
      %1032 = vmatprep.subr.bf16.mxu0 %v940
      %1033 = vmatpush1.bf16.msra.mxu0 %v939
      %1034 = vmatprep.subr.bf16.mxu0 %v944
      %1035 = vmatpush1.bf16.msra.mxu0 %v943
      %1036 = vmatprep.subr.bf16.mxu0 %v948
      %1037 = vmatpush1.bf16.msra.mxu0 %v947
      %1038 = vmatprep.subr.bf16.mxu0 0
      %1039 = vmatpush1.bf16.msra.mxu0 0
      %1040 = vmatprep.subr.bf16.mxu0 0
      %1041 = vmatpush1.bf16.msra.mxu0 0
      %1042 = vmatprep.mubr.bf16.mxu0 %v1008
      %1043 = vmatmul.mubr.bf16.gmra.mrb[0].mxu0 %v724
      %v1044 = vpop.f32.mrb[0].mxu0
      %v1045 = vadd.f32 0.0, %v1044
      %v1046 = vpop.f32.mrb[0].mxu0
      %v1047 = vadd.f32 0.0, %v1046
      %v1048 = vpop.f32.mrb[0].mxu0
      %v1049 = vpop.f32.mrb[0].mxu0
      %1050 = vdwg.mxu0
      %1051 = vmatprep.subr.bf16.mxu0 %v898
      %1052 = vmatpush1.bf16.msra.mxu0 %v897
      %1053 = vmatprep.subr.bf16.mxu0 %v902
      %1054 = vmatpush1.bf16.msra.mxu0 %v901
      %1055 = vmatprep.subr.bf16.mxu0 %v906
      %1056 = vmatpush1.bf16.msra.mxu0 %v905
      %1057 = vmatprep.subr.bf16.mxu0 %v910
      %1058 = vmatpush1.bf16.msra.mxu0 %v909
      %1059 = vmatprep.subr.bf16.mxu0 %v914
      %1060 = vmatpush1.bf16.msra.mxu0 %v913
      %1061 = vmatprep.subr.bf16.mxu0 %v918
      %1062 = vmatpush1.bf16.msra.mxu0 %v917
      %1063 = vmatprep.subr.bf16.mxu0 %v922
      %1064 = vmatpush1.bf16.msra.mxu0 %v921
      %1065 = vmatprep.subr.bf16.mxu0 %v926
      %1066 = vmatpush1.bf16.msra.mxu0 %v925
      %1067 = vmatprep.subr.bf16.mxu0 %v930
      %1068 = vmatpush1.bf16.msra.mxu0 %v929
      %1069 = vmatprep.subr.bf16.mxu0 %v934
      %1070 = vmatpush1.bf16.msra.mxu0 %v933
      %1071 = vmatprep.subr.bf16.mxu0 %v938
      %1072 = vmatpush1.bf16.msra.mxu0 %v937
      %1073 = vmatprep.subr.bf16.mxu0 %v942
      %1074 = vmatpush1.bf16.msra.mxu0 %v941
      %1075 = vmatprep.subr.bf16.mxu0 %v946
      %1076 = vmatpush1.bf16.msra.mxu0 %v945
      %1077 = vmatprep.subr.bf16.mxu0 %v950
      %1078 = vmatpush1.bf16.msra.mxu0 %v949
      %1079 = vmatprep.subr.bf16.mxu0 0
      %1080 = vmatpush1.bf16.msra.mxu0 0
      %1081 = vmatprep.subr.bf16.mxu0 0
      %1082 = vmatpush1.bf16.msra.mxu0 0
      %1083 = vmatprep.mubr.bf16.mxu0 %v1008
      %1084 = vmatmul.mubr.bf16.gmra.mrb[0].mxu0 %v724
      %v1085 = vpop.f32.mrb[0].mxu0
      %v1086 = vadd.f32 0.0, %v1085
      %v1087 = vpop.f32.mrb[0].mxu0
      %v1088 = vadd.f32 0.0, %v1087
      %v1089 = vpop.f32.mrb[0].mxu0
      %v1090 = vpop.f32.mrb[0].mxu0
      %1091 = vdwg.mxu0
      %v1093 = vunpack.c.l.b16 %v180
      %v1094 = vunpack.c.h.b16 %v180
      %v1095 = vpack.c.b16 %v1093, %v1093
      %v1096 = vpack.c.b16 %v1094, %v1094
      %v1154 = vunpack.c.l.b16 %v293
      %v1155 = vunpack.c.h.b16 %v293
      %v1156 = vunpack.c.l.b16 %v294
      %v1157 = vunpack.c.h.b16 %v294
      %v1158 = vunpack.c.l.b16 %v295
      %v1159 = vunpack.c.h.b16 %v295
      %v1160 = vunpack.c.l.b16 %v296
      %v1161 = vunpack.c.h.b16 %v296
      %v1162 = vunpack.c.l.b16 %v297
      %v1163 = vunpack.c.h.b16 %v297
      %v1164 = vunpack.c.l.b16 %v298
      %v1165 = vunpack.c.h.b16 %v298
      %v1166 = vunpack.c.l.b16 %v299
      %v1167 = vunpack.c.h.b16 %v299
      %v1168 = vunpack.c.l.b16 %v300
      %v1169 = vunpack.c.h.b16 %v300
      %v1170 = vunpack.c.l.b16 %v301
      %v1171 = vunpack.c.h.b16 %v301
      %v1172 = vunpack.c.l.b16 %v302
      %v1173 = vunpack.c.h.b16 %v302
      %v1174 = vunpack.c.l.b16 %v303
      %v1175 = vunpack.c.h.b16 %v303
      %v1176 = vunpack.c.l.b16 %v304
      %v1177 = vunpack.c.h.b16 %v304
      %v1178 = vunpack.c.l.b16 %v305
      %v1179 = vunpack.c.h.b16 %v305
      %v1180 = vunpack.c.l.b16 %v306
      %v1181 = vunpack.c.h.b16 %v306
      %v1182 = vunpack.c.l.b16 %v307
      %v1183 = vunpack.c.h.b16 %v307
      %v1184 = vunpack.c.l.b16 %v308
      %v1185 = vunpack.c.h.b16 %v308
      %v1186 = vunpack.c.l.b16 %v309
      %v1187 = vunpack.c.h.b16 %v309
      %v1188 = vunpack.c.l.b16 %v310
      %v1189 = vunpack.c.h.b16 %v310
      %v1190 = vunpack.c.l.b16 %v311
      %v1191 = vunpack.c.h.b16 %v311
      %v1192 = vunpack.c.l.b16 %v312
      %v1193 = vunpack.c.h.b16 %v312
      %v1194 = vunpack.c.l.b16 %v313
      %v1195 = vunpack.c.h.b16 %v313
      %v1196 = vunpack.c.l.b16 %v314
      %v1197 = vunpack.c.h.b16 %v314
      %v1198 = vunpack.c.l.b16 %v315
      %v1199 = vunpack.c.h.b16 %v315
      %v1200 = vunpack.c.l.b16 %v316
      %v1201 = vunpack.c.h.b16 %v316
      %v1202 = vunpack.c.l.b16 %v317
      %v1203 = vunpack.c.h.b16 %v317
      %v1204 = vunpack.c.l.b16 %v318
      %v1205 = vunpack.c.h.b16 %v318
      %v1206 = vunpack.c.l.b16 %v319
      %v1207 = vunpack.c.h.b16 %v319
      %v1208 = vunpack.c.l.b16 %v320
      %v1209 = vunpack.c.h.b16 %v320
      %v1210 = vunpack.c.l.b16 %v321
      %v1211 = vunpack.c.h.b16 %v321
      %v1212 = vunpack.c.l.b16 %v322
      %v1213 = vunpack.c.h.b16 %v322
      %v1214 = vunpack.c.l.b16 %v323
      %v1215 = vunpack.c.h.b16 %v323
      %v1216 = vunpack.c.l.b16 %v324
      %v1217 = vunpack.c.h.b16 %v324
      %v1218 = vunpack.c.l.b16 %v325
      %v1219 = vunpack.c.h.b16 %v325
      %v1220 = vunpack.c.l.b16 %v326
      %v1221 = vunpack.c.h.b16 %v326
      %v1222 = vunpack.c.l.b16 %v327
      %v1223 = vunpack.c.h.b16 %v327
      %v1224 = vunpack.c.l.b16 %v328
      %v1225 = vunpack.c.h.b16 %v328
      %v1226 = vunpack.c.l.b16 %v329
      %v1227 = vunpack.c.h.b16 %v329
      %v1228 = vunpack.c.l.b16 %v330
      %v1229 = vunpack.c.h.b16 %v330
      %v1230 = vunpack.c.l.b16 %v331
      %v1231 = vunpack.c.h.b16 %v331
      %v1232 = vunpack.c.l.b16 %v332
      %v1233 = vunpack.c.h.b16 %v332
      %v1234 = vunpack.c.l.b16 %v333
      %v1235 = vunpack.c.h.b16 %v333
      %v1236 = vunpack.c.l.b16 %v334
      %v1237 = vunpack.c.h.b16 %v334
      %v1238 = vunpack.c.l.b16 %v335
      %v1239 = vunpack.c.h.b16 %v335
      %v1240 = vunpack.c.l.b16 %v336
      %v1241 = vunpack.c.h.b16 %v336
      %v1242 = vunpack.c.l.b16 %v337
      %v1243 = vunpack.c.h.b16 %v337
      %v1244 = vunpack.c.l.b16 %v338
      %v1245 = vunpack.c.h.b16 %v338
      %v1246 = vunpack.c.l.b16 %v339
      %v1247 = vunpack.c.h.b16 %v339
      %v1248 = vunpack.c.l.b16 %v340
      %v1249 = vunpack.c.h.b16 %v340
      %v1250 = vunpack.c.l.b16 %v341
      %v1251 = vunpack.c.h.b16 %v341
      %v1252 = vunpack.c.l.b16 %v342
      %v1253 = vunpack.c.h.b16 %v342
      %v1254 = vunpack.c.l.b16 %v343
      %v1255 = vunpack.c.h.b16 %v343
      %v1256 = vunpack.c.l.b16 %v344
      %v1257 = vunpack.c.h.b16 %v344
      %v1258 = vunpack.c.l.b16 %v345
      %v1259 = vunpack.c.h.b16 %v345
      %v1260 = vunpack.c.l.b16 %v346
      %v1261 = vunpack.c.h.b16 %v346
      %v1262 = vunpack.c.l.b16 %v347
      %v1263 = vunpack.c.h.b16 %v347
      %v1264 = vunpack.c.l.b16 %v348
      %v1265 = vunpack.c.h.b16 %v348
      %v1266 = vpack.c.b16 %v1158, %v1154
      %v1267 = vpack.c.b16 %v1159, %v1155
      %v1268 = vpack.c.b16 %v1160, %v1156
      %v1269 = vpack.c.b16 %v1161, %v1157
      %v1270 = vpack.c.b16 %v1166, %v1162
      %v1271 = vpack.c.b16 %v1167, %v1163
      %v1272 = vpack.c.b16 %v1168, %v1164
      %v1273 = vpack.c.b16 %v1169, %v1165
      %v1274 = vpack.c.b16 %v1174, %v1170
      %v1275 = vpack.c.b16 %v1175, %v1171
      %v1276 = vpack.c.b16 %v1176, %v1172
      %v1277 = vpack.c.b16 %v1177, %v1173
      %v1278 = vpack.c.b16 %v1182, %v1178
      %v1279 = vpack.c.b16 %v1183, %v1179
      %v1280 = vpack.c.b16 %v1184, %v1180
      %v1281 = vpack.c.b16 %v1185, %v1181
      %v1282 = vpack.c.b16 %v1190, %v1186
      %v1283 = vpack.c.b16 %v1191, %v1187
      %v1284 = vpack.c.b16 %v1192, %v1188
      %v1285 = vpack.c.b16 %v1193, %v1189
      %v1286 = vpack.c.b16 %v1198, %v1194
      %v1287 = vpack.c.b16 %v1199, %v1195
      %v1288 = vpack.c.b16 %v1200, %v1196
      %v1289 = vpack.c.b16 %v1201, %v1197
      %v1290 = vpack.c.b16 %v1206, %v1202
      %v1291 = vpack.c.b16 %v1207, %v1203
      %v1292 = vpack.c.b16 %v1208, %v1204
      %v1293 = vpack.c.b16 %v1209, %v1205
      %v1294 = vpack.c.b16 %v1214, %v1210
      %v1295 = vpack.c.b16 %v1215, %v1211
      %v1296 = vpack.c.b16 %v1216, %v1212
      %v1297 = vpack.c.b16 %v1217, %v1213
      %v1298 = vpack.c.b16 %v1222, %v1218
      %v1299 = vpack.c.b16 %v1223, %v1219
      %v1300 = vpack.c.b16 %v1224, %v1220
      %v1301 = vpack.c.b16 %v1225, %v1221
      %v1302 = vpack.c.b16 %v1230, %v1226
      %v1303 = vpack.c.b16 %v1231, %v1227
      %v1304 = vpack.c.b16 %v1232, %v1228
      %v1305 = vpack.c.b16 %v1233, %v1229
      %v1306 = vpack.c.b16 %v1238, %v1234
      %v1307 = vpack.c.b16 %v1239, %v1235
      %v1308 = vpack.c.b16 %v1240, %v1236
      %v1309 = vpack.c.b16 %v1241, %v1237
      %v1310 = vpack.c.b16 %v1246, %v1242
      %v1311 = vpack.c.b16 %v1247, %v1243
      %v1312 = vpack.c.b16 %v1248, %v1244
      %v1313 = vpack.c.b16 %v1249, %v1245
      %v1314 = vpack.c.b16 %v1254, %v1250
      %v1315 = vpack.c.b16 %v1255, %v1251
      %v1316 = vpack.c.b16 %v1256, %v1252
      %v1317 = vpack.c.b16 %v1257, %v1253
      %v1318 = vpack.c.b16 %v1262, %v1258
      %v1319 = vpack.c.b16 %v1263, %v1259
      %v1320 = vpack.c.b16 %v1264, %v1260
      %v1321 = vpack.c.b16 %v1265, %v1261
      %v1379 = vsel %vm635, %v1096, 0
      %1381 = vmatprep.subr.bf16.mxu0 %v1267
      %1382 = vmatpush1.bf16.msra.mxu0 %v1266
      %1383 = vmatprep.subr.bf16.mxu0 %v1271
      %1384 = vmatpush1.bf16.msra.mxu0 %v1270
      %1385 = vmatprep.subr.bf16.mxu0 %v1275
      %1386 = vmatpush1.bf16.msra.mxu0 %v1274
      %1387 = vmatprep.subr.bf16.mxu0 %v1279
      %1388 = vmatpush1.bf16.msra.mxu0 %v1278
      %1389 = vmatprep.subr.bf16.mxu0 %v1283
      %1390 = vmatpush1.bf16.msra.mxu0 %v1282
      %1391 = vmatprep.subr.bf16.mxu0 %v1287
      %1392 = vmatpush1.bf16.msra.mxu0 %v1286
      %1393 = vmatprep.subr.bf16.mxu0 %v1291
      %1394 = vmatpush1.bf16.msra.mxu0 %v1290
      %1395 = vmatprep.subr.bf16.mxu0 %v1295
      %1396 = vmatpush1.bf16.msra.mxu0 %v1294
      %1397 = vmatprep.subr.bf16.mxu0 %v1299
      %1398 = vmatpush1.bf16.msra.mxu0 %v1298
      %1399 = vmatprep.subr.bf16.mxu0 %v1303
      %1400 = vmatpush1.bf16.msra.mxu0 %v1302
      %1401 = vmatprep.subr.bf16.mxu0 %v1307
      %1402 = vmatpush1.bf16.msra.mxu0 %v1306
      %1403 = vmatprep.subr.bf16.mxu0 %v1311
      %1404 = vmatpush1.bf16.msra.mxu0 %v1310
      %1405 = vmatprep.subr.bf16.mxu0 %v1315
      %1406 = vmatpush1.bf16.msra.mxu0 %v1314
      %1407 = vmatprep.subr.bf16.mxu0 %v1319
      %1408 = vmatpush1.bf16.msra.mxu0 %v1318
      %1409 = vmatprep.subr.bf16.mxu0 0
      %1410 = vmatpush1.bf16.msra.mxu0 0
      %1411 = vmatprep.subr.bf16.mxu0 0
      %1412 = vmatpush1.bf16.msra.mxu0 0
      %1413 = vmatprep.mubr.bf16.mxu0 %v1379
      %1414 = vmatmul.mubr.bf16.gmra.mrb[0].mxu0 %v1095
      %v1415 = vpop.f32.mrb[0].mxu0
      %v1416 = vadd.f32 0.0, %v1415
      %v1417 = vpop.f32.mrb[0].mxu0
      %v1418 = vadd.f32 0.0, %v1417
      %v1419 = vpop.f32.mrb[0].mxu0
      %v1420 = vpop.f32.mrb[0].mxu0
      %1421 = vdwg.mxu0
      %1422 = vmatprep.subr.bf16.mxu0 %v1269
      %1423 = vmatpush1.bf16.msra.mxu0 %v1268
      %1424 = vmatprep.subr.bf16.mxu0 %v1273
      %1425 = vmatpush1.bf16.msra.mxu0 %v1272
      %1426 = vmatprep.subr.bf16.mxu0 %v1277
      %1427 = vmatpush1.bf16.msra.mxu0 %v1276
      %1428 = vmatprep.subr.bf16.mxu0 %v1281
      %1429 = vmatpush1.bf16.msra.mxu0 %v1280
      %1430 = vmatprep.subr.bf16.mxu0 %v1285
      %1431 = vmatpush1.bf16.msra.mxu0 %v1284
      %1432 = vmatprep.subr.bf16.mxu0 %v1289
      %1433 = vmatpush1.bf16.msra.mxu0 %v1288
      %1434 = vmatprep.subr.bf16.mxu0 %v1293
      %1435 = vmatpush1.bf16.msra.mxu0 %v1292
      %1436 = vmatprep.subr.bf16.mxu0 %v1297
      %1437 = vmatpush1.bf16.msra.mxu0 %v1296
      %1438 = vmatprep.subr.bf16.mxu0 %v1301
      %1439 = vmatpush1.bf16.msra.mxu0 %v1300
      %1440 = vmatprep.subr.bf16.mxu0 %v1305
      %1441 = vmatpush1.bf16.msra.mxu0 %v1304
      %1442 = vmatprep.subr.bf16.mxu0 %v1309
      %1443 = vmatpush1.bf16.msra.mxu0 %v1308
      %1444 = vmatprep.subr.bf16.mxu0 %v1313
      %1445 = vmatpush1.bf16.msra.mxu0 %v1312
      %1446 = vmatprep.subr.bf16.mxu0 %v1317
      %1447 = vmatpush1.bf16.msra.mxu0 %v1316
      %1448 = vmatprep.subr.bf16.mxu0 %v1321
      %1449 = vmatpush1.bf16.msra.mxu0 %v1320
      %1450 = vmatprep.subr.bf16.mxu0 0
      %1451 = vmatpush1.bf16.msra.mxu0 0
      %1452 = vmatprep.subr.bf16.mxu0 0
      %1453 = vmatpush1.bf16.msra.mxu0 0
      %1454 = vmatprep.mubr.bf16.mxu0 %v1379
      %1455 = vmatmul.mubr.bf16.gmra.mrb[0].mxu0 %v1095
      %v1456 = vpop.f32.mrb[0].mxu0
      %v1457 = vadd.f32 0.0, %v1456
      %v1458 = vpop.f32.mrb[0].mxu0
      %v1459 = vadd.f32 0.0, %v1458
      %v1460 = vpop.f32.mrb[0].mxu0
      %v1461 = vpop.f32.mrb[0].mxu0
      %1462 = vdwg.mxu0
      %v1463 = vmul.f32 %v674, %v674
      %v1464 = vmul.f32 %v676, %v676
      %v1465 = vmul.f32 %v1045, %v1045
      %v1466 = vmul.f32 %v1047, %v1047
      %v1467 = vmul.f32 %v1416, %v1416
      %v1468 = vmul.f32 %v1418, %v1418
      %v1469 = vmul.f32 %v715, %v715
      %v1470 = vmul.f32 %v717, %v717
      %v1471 = vmul.f32 %v1086, %v1086
      %v1472 = vmul.f32 %v1088, %v1088
      %v1473 = vmul.f32 %v1457, %v1457
      %v1474 = vmul.f32 %v1459, %v1459
      %v1475 = vadd.f32 %v1463, %v1469
      %v1476 = vadd.f32 %v1464, %v1470
      %v1477 = vadd.f32 %v1465, %v1471
      %v1478 = vadd.f32 %v1466, %v1472
      %v1479 = vadd.f32 %v1467, %v1473
      %v1480 = vadd.f32 %v1468, %v1474
      %1481 = vst [vmem:[%s175] sm:$0xff] %v1475
      %1482 = vst [vmem:[%s175 + $0x8] sm:$0xff] %v1476
      %1483 = vst [vmem:[%s175 + $0x10] sm:$0xff] %v1477
      %1484 = vst [vmem:[%s175 + $0x18] sm:$0xff] %v1478
      %1485 = vst [vmem:[%s175 + $0x20] sm:$0xff] %v1479
      %1486 = vst [vmem:[%s175 + $0x28] sm:$0xff] %v1480
      %s1487 = smul.u32 3, %s13
      %p1488 = scmp.lt.s32.totalorder %s1487, 8
      %s1489 = scalar_select %p1488, %s1487, 8
      %s1490 = smul.addr %s1489, 2
      %s1491 = smul.addr %s1490, 8
      %s1492 = scalar_lea.vmem %s2, %s1491
      // Predicated region
      $region29: #{_qtransform_forward.3} parent=27 // pred_check
        %p1493 = pneg %p83
      $region30: #{_qtransform_forward.3} parent=27 // pred_check_branch
        %1495 = sbr.rel (%p1493) target = $region32
      $region31: #{_qtransform_forward.3} parent=27 // pred_region
        %s1496 = smul.u32 3, %s13
      $region32: #{_qtransform_forward.3} parent=27 // pred_fallthru
        _
    $region28: #{_qtransform_forward.3} parent=5 // pred_fallthru
      _
    %p1497 = scmp.le.s32.totalorder 2, %s8
    // Predicated region
    $region33: #{_qtransform_forward.3} parent=5 // pred_check
      %p1498 = pneg %p1497
    $region34: #{_qtransform_forward.3} parent=5 // pred_check_branch
      %1500 = sbr.rel (%p1498) target = $region36
    $region35: #{_qtransform_forward.3} parent=5 // pred_region
      %s1501 = ssub.s32 %s8, 2
      // Predicated region
      $region37: #{_qtransform_forward.3} parent=35 // pred_check
        %p1502 = pneg %p89
      $region38: #{_qtransform_forward.3} parent=35 // pred_check_branch
        %1504 = sbr.rel (%p1502) target = $region40
      $region39: #{_qtransform_forward.3} parent=35 // pred_region
        %s1505 = smul.u32 3, %s14
        %p1506 = scmp.lt.s32.totalorder %s1505, 8
        %s1507 = scalar_select %p1506, %s1505, 8
        %s1508 = smul.addr %s1507, 2
        %s1509 = smul.addr %s1508, 8
        %s1510 = scalar_lea.vmem %s2, %s1509
      $region40: #{_qtransform_forward.3} parent=35 // pred_fallthru
        _
    $region36: #{_qtransform_forward.3} parent=5 // pred_fallthru
      _
  $region6: #{_qtransform_forward.3} parent=0 // loop_footer
    %s12 = sadd.s32 1, %s8
  $region7: #{_qtransform_forward.3} parent=0 // loop_footer_branch
    %7 = sbr.rel target = $region3
  $region8: #{_qtransform_forward.3} parent=0 // loop_exit
    _

// kernel: _qtransform_forward.4
$region0: #{_qtransform_forward.4}
  #allocation0 [shape = 'u32[]', space=smem, size = 0x4, offset = 0x4, fixed_abs, tag = 'smem constant byte address 0x4 - core index']
  #allocation1 [shape = 'u32[144,128]{1,0:T(1,128)}', space=vmem, size = 0x12000, scoped, tag = 'internal scratch']
  %s0 = inlined_call_operand.vmem [shape: f32[9,8,256], index: 0, kind: input, shape index: {}]
  %s1 = inlined_call_operand.vmem [shape: f32[9,8,1], index: 1, kind: input, shape index: {}]
  %s2 = inlined_call_operand.vmem [shape: bf16[9,256,64], index: 2, kind: input, shape index: {}]
  %s3 = inlined_call_operand.vmem [shape: f32[9,8,64], index: 3, kind: output, shape index: {}]
  %s4 = sld [smem:[#allocation0]]
  $region45: #{_qtransform_forward.4} parent=0
    _
  %s6 = ssub.s32 1, %s4
  %s7 = scalar_select 0, %s6, %s4
  loop: start=0, step=1, limit=5
  $region2: #{_qtransform_forward.4} parent=0 // loop_pre_header
    _
  $region3: #{_qtransform_forward.4} parent=0 // loop_header
    %s9 = sphi 0, %s13
    %p10 = scmp.ge.s32.totalorder %s9, 5
    %s19 = sphi 0, %s21
    %s22 = sphi 0, %s19
    %s23 = sphi 0, %s22
    %s39 = sphi 0, %s23
    %s45 = sphi 0, %s47
    %s48 = sphi 0, %s45
    %s49 = sphi 0, %s48
    %s65 = sphi 0, %s49
    %s71 = sphi 0, %s73
    %s74 = sphi 0, %s71
    %s75 = sphi 0, %s74
    %s91 = sphi 0, %s75
    %s97 = sphi 0, %s99
    %s100 = sphi 0, %s97
    %s101 = sphi 0, %s100
    %s117 = sphi 0, %s101
  $region4: #{_qtransform_forward.4} parent=0 // loop_header_branch
    %12 = sbr.rel (%p10) target = $region8
  $region5: #{_qtransform_forward.4} parent=0 // loop_body
    %s14 = ssub.s32 %s9, 1
    %s15 = ssub.s32 %s9, 2
    %s16 = sadd.s32 %s9, 1
    %s17 = ssub.s32 %s9, %s16
    %p18 = scmp.eq.s32.totalorder %s17, 0
    %s20 = sadd.s32 %s19, 1
    %s21 = scalar_select %p18, %s19, %s20
    %p24 = pneg %p18
    %p25 = scmp.eq.s32.totalorder %s9, 2
    %p26 = por %p24, %p25
    %p27 = scmp.ne.s32.totalorder %s19, %s22
    %p28 = scmp.eq.s32.totalorder %s9, 0
    %p29 = por %p27, %p28
    %p30 = scmp.ne.s32.totalorder %s19, %s22
    %p31 = scmp.eq.s32.totalorder %s14, 2
    %p32 = por %p30, %p31
    %p33 = scmp.ne.s32.totalorder %s22, %s23
    %p34 = scmp.eq.s32.totalorder %s14, 0
    %p35 = por %p33, %p34
    %p36 = scmp.ne.s32.totalorder %s22, %s23
    %p37 = scmp.eq.s32.totalorder %s15, 2
    %p38 = por %p36, %p37
    %p40 = scmp.ne.s32.totalorder %s23, %s39
    %p41 = scmp.eq.s32.totalorder %s15, 0
    %p42 = por %p40, %p41
    %s43 = ssub.s32 %s9, %s16
    %p44 = scmp.eq.s32.totalorder %s43, 0
    %s46 = sadd.s32 %s45, 1
    %s47 = scalar_select %p44, %s45, %s46
    %p50 = pneg %p44
    %p51 = scmp.eq.s32.totalorder %s9, 2
    %p52 = por %p50, %p51
    %p53 = scmp.ne.s32.totalorder %s45, %s48
    %p54 = scmp.eq.s32.totalorder %s9, 0
    %p55 = por %p53, %p54
    %p56 = scmp.ne.s32.totalorder %s45, %s48
    %p57 = scmp.eq.s32.totalorder %s14, 2
    %p58 = por %p56, %p57
    %p59 = scmp.ne.s32.totalorder %s48, %s49
    %p60 = scmp.eq.s32.totalorder %s14, 0
    %p61 = por %p59, %p60
    %p62 = scmp.ne.s32.totalorder %s48, %s49
    %p63 = scmp.eq.s32.totalorder %s15, 2
    %p64 = por %p62, %p63
    %p66 = scmp.ne.s32.totalorder %s49, %s65
    %p67 = scmp.eq.s32.totalorder %s15, 0
    %p68 = por %p66, %p67
    %s69 = ssub.s32 %s9, %s16
    %p70 = scmp.eq.s32.totalorder %s69, 0
    %s72 = sadd.s32 %s71, 1
    %s73 = scalar_select %p70, %s71, %s72
    %p76 = pneg %p70
    %p77 = scmp.eq.s32.totalorder %s9, 2
    %p78 = por %p76, %p77
    %p79 = scmp.ne.s32.totalorder %s71, %s74
    %p80 = scmp.eq.s32.totalorder %s9, 0
    %p81 = por %p79, %p80
    %p82 = scmp.ne.s32.totalorder %s71, %s74
    %p83 = scmp.eq.s32.totalorder %s14, 2
    %p84 = por %p82, %p83
    %p85 = scmp.ne.s32.totalorder %s74, %s75
    %p86 = scmp.eq.s32.totalorder %s14, 0
    %p87 = por %p85, %p86
    %p88 = scmp.ne.s32.totalorder %s74, %s75
    %p89 = scmp.eq.s32.totalorder %s15, 2
    %p90 = por %p88, %p89
    %p92 = scmp.ne.s32.totalorder %s75, %s91
    %p93 = scmp.eq.s32.totalorder %s15, 0
    %p94 = por %p92, %p93
    %s95 = ssub.s32 %s9, %s16
    %p96 = scmp.eq.s32.totalorder %s95, 0
    %s98 = sadd.s32 %s97, 1
    %s99 = scalar_select %p96, %s97, %s98
    %p102 = pneg %p96
    %p103 = scmp.eq.s32.totalorder %s9, 2
    %p104 = por %p102, %p103
    %p105 = scmp.ne.s32.totalorder %s97, %s100
    %p106 = scmp.eq.s32.totalorder %s9, 0
    %p107 = por %p105, %p106
    %p108 = scmp.ne.s32.totalorder %s97, %s100
    %p109 = scmp.eq.s32.totalorder %s14, 2
    %p110 = por %p108, %p109
    %p111 = scmp.ne.s32.totalorder %s100, %s101
    %p112 = scmp.eq.s32.totalorder %s14, 0
    %p113 = por %p111, %p112
    %p114 = scmp.ne.s32.totalorder %s100, %s101
    %p115 = scmp.eq.s32.totalorder %s15, 2
    %p116 = por %p114, %p115
    %p118 = scmp.ne.s32.totalorder %s101, %s117
    %p119 = scmp.eq.s32.totalorder %s15, 0
    %p120 = por %p118, %p119
    %p121 = scmp.le.s32.totalorder 1, %s9
    %p122 = scmp.lt.s32.totalorder %s9, 4
    %p123 = pnand %p121, %p122
    %p124 = pneg %p123
    // Predicated region
    $region9: #{_qtransform_forward.4} parent=5 // pred_check
      _
    $region10: #{_qtransform_forward.4} parent=5 // pred_check_branch
      %126 = sbr.rel (%p123) target = $region12
    $region11: #{_qtransform_forward.4} parent=5 // pred_region
      %s127 = ssub.s32 %s9, 1
    $region12: #{_qtransform_forward.4} parent=5 // pred_fallthru
      _
    %p128 = scmp.lt.s32.totalorder %s9, 3
    // Predicated region
    $region13: #{_qtransform_forward.4} parent=5 // pred_check
      %p129 = pneg %p128
    $region14: #{_qtransform_forward.4} parent=5 // pred_check_branch
      %131 = sbr.rel (%p129) target = $region16
    $region15: #{_qtransform_forward.4} parent=5 // pred_region
      // Predicated region
      $region17: #{_qtransform_forward.4} parent=15 // pred_check
        %p132 = pneg %p29
      $region18: #{_qtransform_forward.4} parent=15 // pred_check_branch
        %134 = sbr.rel (%p132) target = $region20
      $region19: #{_qtransform_forward.4} parent=15 // pred_region
        %s135 = smul.u32 3, %s9
        %p136 = scmp.lt.s32.totalorder %s135, 8
        %s137 = scalar_select %p136, %s135, 8
        %s138 = smul.addr %s137, 2
        %s139 = smul.addr %s138, 8
        %s140 = scalar_lea.vmem %s0, %s139
        %s141 = smul.u32 3, %s9
      $region20: #{_qtransform_forward.4} parent=15 // pred_fallthru
        _
      // Predicated region
      $region21: #{_qtransform_forward.4} parent=15 // pred_check
        %p142 = pneg %p55
      $region22: #{_qtransform_forward.4} parent=15 // pred_check_branch
        %144 = sbr.rel (%p142) target = $region24
      $region23: #{_qtransform_forward.4} parent=15 // pred_region
        %s145 = smul.u32 3, %s9
        %p146 = scmp.lt.s32.totalorder %s145, 8
        %s147 = scalar_select %p146, %s145, 8
        %s148 = smul.addr %s147, 8
        %s149 = scalar_lea.vmem %s1, %s148
        %s150 = smul.u32 3, %s9
      $region24: #{_qtransform_forward.4} parent=15 // pred_fallthru
        _
      // Predicated region
      $region25: #{_qtransform_forward.4} parent=15 // pred_check
        %p151 = pneg %p81
      $region26: #{_qtransform_forward.4} parent=15 // pred_check_branch
        %153 = sbr.rel (%p151) target = $region28
      $region27: #{_qtransform_forward.4} parent=15 // pred_region
        %s154 = smul.u32 3, %s9
        %p155 = scmp.lt.s32.totalorder %s154, 8
        %s156 = scalar_select %p155, %s154, 8
        %s157 = smul.addr %s156, 32
        %s158 = smul.addr %s157, 4
        %s159 = scalar_lea.vmem %s2, %s158
        %s160 = smul.u32 3, %s9
      $region28: #{_qtransform_forward.4} parent=15 // pred_fallthru
        _
    $region16: #{_qtransform_forward.4} parent=5 // pred_fallthru
      _
    %p161 = scmp.le.s32.totalorder 1, %s9
    %p162 = scmp.lt.s32.totalorder %s9, 4
    %p163 = pnand %p161, %p162
    %p164 = pneg %p163
    // Predicated region
    $region29: #{_qtransform_forward.4} parent=5 // pred_check
      _
    $region30: #{_qtransform_forward.4} parent=5 // pred_check_branch
      %166 = sbr.rel (%p163) target = $region32
    $region31: #{_qtransform_forward.4} parent=5 // pred_region
      %s167 = ssub.s32 %s9, 1
      %s168 = smul.u32 3, %s14
      %p169 = scmp.lt.s32.totalorder %s168, 8
      %s170 = scalar_select %p169, %s168, 8
      %s171 = smul.addr %s170, 2
      %s172 = smul.addr %s171, 8
      %s173 = scalar_lea.vmem %s0, %s172
      %p174 = pneg %p35
      %p175 = pneg %p32
      %s176 = smul.u32 3, %s14
      %p177 = scmp.lt.s32.totalorder %s176, 8
      %s178 = scalar_select %p177, %s176, 8
      %s179 = smul.addr %s178, 8
      %s180 = scalar_lea.vmem %s1, %s179
      %p181 = pneg %p61
      %p182 = pneg %p58
      %s183 = smul.u32 3, %s14
      %p184 = scmp.lt.s32.totalorder %s183, 8
      %s185 = scalar_select %p184, %s183, 8
      %s186 = smul.addr %s185, 32
      %s187 = smul.addr %s186, 4
      %s188 = scalar_lea.vmem %s2, %s187
      %p189 = pneg %p87
      %p190 = pneg %p84
      %p191 = pneg %p113
      %p192 = pneg %p110
      %s193 = smul.u32 3, %s14
      %p194 = scmp.lt.s32.totalorder %s193, 8
      %s195 = scalar_select %p194, %s193, 8
      %s196 = smul.addr %s195, 8
      %s197 = scalar_lea.vmem %s3, %s196
      %s198 = smul.u32 3, %s14
      %p199 = scmp.lt.s32.totalorder %s198, 8
      %s200 = scalar_select %p199, %s198, 8
      %s201 = smul.addr %s200, 2
      %s202 = smul.addr %s201, 8
      %s203 = scalar_lea.vmem %s0, %s202
      %s204 = smul.u32 3, %s14
      %s205 = smul.u32 3, %s14
      %p206 = scmp.lt.s32.totalorder %s205, 8
      %s207 = scalar_select %p206, %s205, 8
      %s208 = smul.addr %s207, 8
      %s209 = scalar_lea.vmem %s1, %s208
      %s210 = smul.u32 3, %s14
      %s211 = smul.u32 3, %s14
      %p212 = scmp.lt.s32.totalorder %s211, 8
      %s213 = scalar_select %p212, %s211, 8
      %s214 = smul.addr %s213, 32
      %s215 = smul.addr %s214, 4
      %s216 = scalar_lea.vmem %s2, %s215
      %s217 = smul.u32 3, %s14
      %s218 = smul.u32 3, %s14
      %p219 = scmp.lt.s32.totalorder %s218, 8
      %s220 = scalar_select %p219, %s218, 8
      %s221 = smul.addr %s220, 8
      %s222 = scalar_lea.vmem %s3, %s221
      %s223 = smul.u32 3, %s14
      %v225 = vld [vmem:[%s203] sm:$0xff]
      %v226 = vld [vmem:[%s203 + $0x8] sm:$0xff]
      %v227 = vld [vmem:[%s203 + $0x10] sm:$0xff]
      %v228 = vld [vmem:[%s203 + $0x18] sm:$0xff]
      %v229 = vld [vmem:[%s203 + $0x20] sm:$0xff]
      %v230 = vld [vmem:[%s203 + $0x28] sm:$0xff]
      %v231 = vld [vmem:[%s209] sm:$0xff]
      %v232 = vld [vmem:[%s209 + $0x8] sm:$0xff]
      %v233 = vld [vmem:[%s209 + $0x10] sm:$0xff]
      %235 = vset.pattern.permute.xlu0 0
      %236 = vperm.xlu0 %235, %v231
      %v237 = vpop.permute.xlu0 %236
      %240 = vset.pattern.permute.xlu0 0
      %241 = vperm.xlu0 %240, %v232
      %v242 = vpop.permute.xlu0 %241
      %245 = vset.pattern.permute.xlu0 0
      %246 = vperm.xlu0 %245, %v233
      %v247 = vpop.permute.xlu0 %246
      %v249 = vmul.f32 %v225, %v237
      %v250 = vmul.f32 %v226, %v237
      %v251 = vmul.f32 %v227, %v242
      %v252 = vmul.f32 %v228, %v242
      %v253 = vmul.f32 %v229, %v247
      %v254 = vmul.f32 %v230, %v247
      %v255 = vpack.c.bf16 %v249, %v249
      %v256 = vpack.c.bf16 %v250, %v250
      %v257 = vpack.c.bf16 %v251, %v251
      %v258 = vpack.c.bf16 %v252, %v252
      %v259 = vpack.c.bf16 %v253, %v253
      %v260 = vpack.c.bf16 %v254, %v254
      %v261 = vld [vmem:[%s216] sm:$0xf]
      %v262 = vld [vmem:[%s216 + $0x4] sm:$0xf]
      %v263 = vld [vmem:[%s216 + $0x8] sm:$0xf]
      %v264 = vld [vmem:[%s216 + $0xc] sm:$0xf]
      %v265 = vld [vmem:[%s216 + $0x10] sm:$0xf]
      %v266 = vld [vmem:[%s216 + $0x14] sm:$0xf]
      %v267 = vld [vmem:[%s216 + $0x18] sm:$0xf]
      %v268 = vld [vmem:[%s216 + $0x1c] sm:$0xf]
      %v269 = vld [vmem:[%s216 + $0x20] sm:$0xf]
      %v270 = vld [vmem:[%s216 + $0x24] sm:$0xf]
      %v271 = vld [vmem:[%s216 + $0x28] sm:$0xf]
      %v272 = vld [vmem:[%s216 + $0x2c] sm:$0xf]
      %v273 = vld [vmem:[%s216 + $0x30] sm:$0xf]
      %v274 = vld [vmem:[%s216 + $0x34] sm:$0xf]
      %v275 = vld [vmem:[%s216 + $0x38] sm:$0xf]
      %v276 = vld [vmem:[%s216 + $0x3c] sm:$0xf]
      %v277 = vld [vmem:[%s216 + $0x40] sm:$0xf]
      %v278 = vld [vmem:[%s216 + $0x44] sm:$0xf]
      %v279 = vld [vmem:[%s216 + $0x48] sm:$0xf]
      %v280 = vld [vmem:[%s216 + $0x4c] sm:$0xf]
      %v281 = vld [vmem:[%s216 + $0x50] sm:$0xf]
      %v282 = vld [vmem:[%s216 + $0x54] sm:$0xf]
      %v283 = vld [vmem:[%s216 + $0x58] sm:$0xf]
      %v284 = vld [vmem:[%s216 + $0x5c] sm:$0xf]
      %v285 = vld [vmem:[%s216 + $0x60] sm:$0xf]
      %v286 = vld [vmem:[%s216 + $0x64] sm:$0xf]
      %v287 = vld [vmem:[%s216 + $0x68] sm:$0xf]
      %v288 = vld [vmem:[%s216 + $0x6c] sm:$0xf]
      %v289 = vld [vmem:[%s216 + $0x70] sm:$0xf]
      %v290 = vld [vmem:[%s216 + $0x74] sm:$0xf]
      %v291 = vld [vmem:[%s216 + $0x78] sm:$0xf]
      %v292 = vld [vmem:[%s216 + $0x7c] sm:$0xf]
      %v293 = vld [vmem:[%s216 + $0x80] sm:$0xf]
      %v294 = vld [vmem:[%s216 + $0x84] sm:$0xf]
      %v295 = vld [vmem:[%s216 + $0x88] sm:$0xf]
      %v296 = vld [vmem:[%s216 + $0x8c] sm:$0xf]
      %v297 = vld [vmem:[%s216 + $0x90] sm:$0xf]
      %v298 = vld [vmem:[%s216 + $0x94] sm:$0xf]
      %v299 = vld [vmem:[%s216 + $0x98] sm:$0xf]
      %v300 = vld [vmem:[%s216 + $0x9c] sm:$0xf]
      %v301 = vld [vmem:[%s216 + $0xa0] sm:$0xf]
      %v302 = vld [vmem:[%s216 + $0xa4] sm:$0xf]
      %v303 = vld [vmem:[%s216 + $0xa8] sm:$0xf]
      %v304 = vld [vmem:[%s216 + $0xac] sm:$0xf]
      %v305 = vld [vmem:[%s216 + $0xb0] sm:$0xf]
      %v306 = vld [vmem:[%s216 + $0xb4] sm:$0xf]
      %v307 = vld [vmem:[%s216 + $0xb8] sm:$0xf]
      %v308 = vld [vmem:[%s216 + $0xbc] sm:$0xf]
      %v309 = vld [vmem:[%s216 + $0xc0] sm:$0xf]
      %v310 = vld [vmem:[%s216 + $0xc4] sm:$0xf]
      %v311 = vld [vmem:[%s216 + $0xc8] sm:$0xf]
      %v312 = vld [vmem:[%s216 + $0xcc] sm:$0xf]
      %v313 = vld [vmem:[%s216 + $0xd0] sm:$0xf]
      %v314 = vld [vmem:[%s216 + $0xd4] sm:$0xf]
      %v315 = vld [vmem:[%s216 + $0xd8] sm:$0xf]
      %v316 = vld [vmem:[%s216 + $0xdc] sm:$0xf]
      %v317 = vld [vmem:[%s216 + $0xe0] sm:$0xf]
      %v318 = vld [vmem:[%s216 + $0xe4] sm:$0xf]
      %v319 = vld [vmem:[%s216 + $0xe8] sm:$0xf]
      %v320 = vld [vmem:[%s216 + $0xec] sm:$0xf]
      %v321 = vld [vmem:[%s216 + $0xf0] sm:$0xf]
      %v322 = vld [vmem:[%s216 + $0xf4] sm:$0xf]
      %v323 = vld [vmem:[%s216 + $0xf8] sm:$0xf]
      %v324 = vld [vmem:[%s216 + $0xfc] sm:$0xf]
      %v325 = vld [vmem:[%s216 + $0x100] sm:$0xf]
      %v326 = vld [vmem:[%s216 + $0x104] sm:$0xf]
      %v327 = vld [vmem:[%s216 + $0x108] sm:$0xf]
      %v328 = vld [vmem:[%s216 + $0x10c] sm:$0xf]
      %v329 = vld [vmem:[%s216 + $0x110] sm:$0xf]
      %v330 = vld [vmem:[%s216 + $0x114] sm:$0xf]
      %v331 = vld [vmem:[%s216 + $0x118] sm:$0xf]
      %v332 = vld [vmem:[%s216 + $0x11c] sm:$0xf]
      %v333 = vld [vmem:[%s216 + $0x120] sm:$0xf]
      %v334 = vld [vmem:[%s216 + $0x124] sm:$0xf]
      %v335 = vld [vmem:[%s216 + $0x128] sm:$0xf]
      %v336 = vld [vmem:[%s216 + $0x12c] sm:$0xf]
      %v337 = vld [vmem:[%s216 + $0x130] sm:$0xf]
      %v338 = vld [vmem:[%s216 + $0x134] sm:$0xf]
      %v339 = vld [vmem:[%s216 + $0x138] sm:$0xf]
      %v340 = vld [vmem:[%s216 + $0x13c] sm:$0xf]
      %v341 = vld [vmem:[%s216 + $0x140] sm:$0xf]
      %v342 = vld [vmem:[%s216 + $0x144] sm:$0xf]
      %v343 = vld [vmem:[%s216 + $0x148] sm:$0xf]
      %v344 = vld [vmem:[%s216 + $0x14c] sm:$0xf]
      %v345 = vld [vmem:[%s216 + $0x150] sm:$0xf]
      %v346 = vld [vmem:[%s216 + $0x154] sm:$0xf]
      %v347 = vld [vmem:[%s216 + $0x158] sm:$0xf]
      %v348 = vld [vmem:[%s216 + $0x15c] sm:$0xf]
      %v349 = vld [vmem:[%s216 + $0x160] sm:$0xf]
      %v350 = vld [vmem:[%s216 + $0x164] sm:$0xf]
      %v351 = vld [vmem:[%s216 + $0x168] sm:$0xf]
      %v352 = vld [vmem:[%s216 + $0x16c] sm:$0xf]
      %v353 = vld [vmem:[%s216 + $0x170] sm:$0xf]
      %v354 = vld [vmem:[%s216 + $0x174] sm:$0xf]
      %v355 = vld [vmem:[%s216 + $0x178] sm:$0xf]
      %v356 = vld [vmem:[%s216 + $0x17c] sm:$0xf]
      %v389 = vunpack.c.l.b16 %v261
      %v390 = vunpack.c.l.b16 %v262
      %v391 = vunpack.c.l.b16 %v263
      %v392 = vunpack.c.l.b16 %v264
      %v393 = vunpack.c.l.b16 %v265
      %v394 = vunpack.c.l.b16 %v266
      %v395 = vunpack.c.l.b16 %v267
      %v396 = vunpack.c.l.b16 %v268
      %v397 = vunpack.c.l.b16 %v269
      %v398 = vunpack.c.l.b16 %v270
      %v399 = vunpack.c.l.b16 %v271
      %v400 = vunpack.c.l.b16 %v272
      %v401 = vunpack.c.l.b16 %v273
      %v402 = vunpack.c.l.b16 %v274
      %v403 = vunpack.c.l.b16 %v275
      %v404 = vunpack.c.l.b16 %v276
      %v405 = vunpack.c.l.b16 %v277
      %v406 = vunpack.c.l.b16 %v278
      %v407 = vunpack.c.l.b16 %v279
      %v408 = vunpack.c.l.b16 %v280
      %v409 = vunpack.c.l.b16 %v281
      %v410 = vunpack.c.l.b16 %v282
      %v411 = vunpack.c.l.b16 %v283
      %v412 = vunpack.c.l.b16 %v284
      %v413 = vunpack.c.l.b16 %v285
      %v414 = vunpack.c.l.b16 %v286
      %v415 = vunpack.c.l.b16 %v287
      %v416 = vunpack.c.l.b16 %v288
      %v417 = vunpack.c.l.b16 %v289
      %v418 = vunpack.c.l.b16 %v290
      %v419 = vunpack.c.l.b16 %v291
      %v420 = vunpack.c.l.b16 %v292
      %v421 = vpack.c.b16 %v390, %v389
      %v422 = vpack.c.b16 %v392, %v391
      %v423 = vpack.c.b16 %v394, %v393
      %v424 = vpack.c.b16 %v396, %v395
      %v425 = vpack.c.b16 %v398, %v397
      %v426 = vpack.c.b16 %v400, %v399
      %v427 = vpack.c.b16 %v402, %v401
      %v428 = vpack.c.b16 %v404, %v403
      %v429 = vpack.c.b16 %v406, %v405
      %v430 = vpack.c.b16 %v408, %v407
      %v431 = vpack.c.b16 %v410, %v409
      %v432 = vpack.c.b16 %v412, %v411
      %v433 = vpack.c.b16 %v414, %v413
      %v434 = vpack.c.b16 %v416, %v415
      %v435 = vpack.c.b16 %v418, %v417
      %v436 = vpack.c.b16 %v420, %v419
      %453 = vmatprep.subr.bf16.mxu0 0
      %454 = vmatpush1.bf16.msra.mxu0 %v421
      %455 = vmatprep.subr.bf16.mxu0 0
      %456 = vmatpush1.bf16.msra.mxu0 %v422
      %457 = vmatprep.subr.bf16.mxu0 0
      %458 = vmatpush1.bf16.msra.mxu0 %v423
      %459 = vmatprep.subr.bf16.mxu0 0
      %460 = vmatpush1.bf16.msra.mxu0 %v424
      %461 = vmatprep.subr.bf16.mxu0 0
      %462 = vmatpush1.bf16.msra.mxu0 %v425
      %463 = vmatprep.subr.bf16.mxu0 0
      %464 = vmatpush1.bf16.msra.mxu0 %v426
      %465 = vmatprep.subr.bf16.mxu0 0
      %466 = vmatpush1.bf16.msra.mxu0 %v427
      %467 = vmatprep.subr.bf16.mxu0 0
      %468 = vmatpush1.bf16.msra.mxu0 %v428
      %469 = vmatprep.subr.bf16.mxu0 0
      %470 = vmatpush1.bf16.msra.mxu0 %v429
      %471 = vmatprep.subr.bf16.mxu0 0
      %472 = vmatpush1.bf16.msra.mxu0 %v430
      %473 = vmatprep.subr.bf16.mxu0 0
      %474 = vmatpush1.bf16.msra.mxu0 %v431
      %475 = vmatprep.subr.bf16.mxu0 0
      %476 = vmatpush1.bf16.msra.mxu0 %v432
      %477 = vmatprep.subr.bf16.mxu0 0
      %478 = vmatpush1.bf16.msra.mxu0 %v433
      %479 = vmatprep.subr.bf16.mxu0 0
      %480 = vmatpush1.bf16.msra.mxu0 %v434
      %481 = vmatprep.subr.bf16.mxu0 0
      %482 = vmatpush1.bf16.msra.mxu0 %v435
      %483 = vmatprep.subr.bf16.mxu0 0
      %484 = vmatpush1.bf16.msra.mxu0 %v436
      %485 = vmatprep.mubr.bf16.mxu0 %v256
      %486 = vmatmul.mubr.bf16.gmra.mrb[0].mxu0 %v255
      %v487 = vpop.f32.mrb[0].mxu0
      %v488 = vadd.f32 0.0, %v487
      %v489 = vpop.f32.mrb[0].mxu0
      %v490 = vpop.f32.mrb[0].mxu0
      %v491 = vpop.f32.mrb[0].mxu0
      %492 = vdwg.mxu0
      %v525 = vunpack.c.l.b16 %v293
      %v526 = vunpack.c.l.b16 %v294
      %v527 = vunpack.c.l.b16 %v295
      %v528 = vunpack.c.l.b16 %v296
      %v529 = vunpack.c.l.b16 %v297
      %v530 = vunpack.c.l.b16 %v298
      %v531 = vunpack.c.l.b16 %v299
      %v532 = vunpack.c.l.b16 %v300
      %v533 = vunpack.c.l.b16 %v301
      %v534 = vunpack.c.l.b16 %v302
      %v535 = vunpack.c.l.b16 %v303
      %v536 = vunpack.c.l.b16 %v304
      %v537 = vunpack.c.l.b16 %v305
      %v538 = vunpack.c.l.b16 %v306
      %v539 = vunpack.c.l.b16 %v307
      %v540 = vunpack.c.l.b16 %v308
      %v541 = vunpack.c.l.b16 %v309
      %v542 = vunpack.c.l.b16 %v310
      %v543 = vunpack.c.l.b16 %v311
      %v544 = vunpack.c.l.b16 %v312
      %v545 = vunpack.c.l.b16 %v313
      %v546 = vunpack.c.l.b16 %v314
      %v547 = vunpack.c.l.b16 %v315
      %v548 = vunpack.c.l.b16 %v316
      %v549 = vunpack.c.l.b16 %v317
      %v550 = vunpack.c.l.b16 %v318
      %v551 = vunpack.c.l.b16 %v319
      %v552 = vunpack.c.l.b16 %v320
      %v553 = vunpack.c.l.b16 %v321
      %v554 = vunpack.c.l.b16 %v322
      %v555 = vunpack.c.l.b16 %v323
      %v556 = vunpack.c.l.b16 %v324
      %v557 = vpack.c.b16 %v526, %v525
      %v558 = vpack.c.b16 %v528, %v527
      %v559 = vpack.c.b16 %v530, %v529
      %v560 = vpack.c.b16 %v532, %v531
      %v561 = vpack.c.b16 %v534, %v533
      %v562 = vpack.c.b16 %v536, %v535
      %v563 = vpack.c.b16 %v538, %v537
      %v564 = vpack.c.b16 %v540, %v539
      %v565 = vpack.c.b16 %v542, %v541
      %v566 = vpack.c.b16 %v544, %v543
      %v567 = vpack.c.b16 %v546, %v545
      %v568 = vpack.c.b16 %v548, %v547
      %v569 = vpack.c.b16 %v550, %v549
      %v570 = vpack.c.b16 %v552, %v551
      %v571 = vpack.c.b16 %v554, %v553
      %v572 = vpack.c.b16 %v556, %v555
      %589 = vmatprep.subr.bf16.mxu0 0
      %590 = vmatpush1.bf16.msra.mxu0 %v557
      %591 = vmatprep.subr.bf16.mxu0 0
      %592 = vmatpush1.bf16.msra.mxu0 %v558
      %593 = vmatprep.subr.bf16.mxu0 0
      %594 = vmatpush1.bf16.msra.mxu0 %v559
      %595 = vmatprep.subr.bf16.mxu0 0
      %596 = vmatpush1.bf16.msra.mxu0 %v560
      %597 = vmatprep.subr.bf16.mxu0 0
      %598 = vmatpush1.bf16.msra.mxu0 %v561
      %599 = vmatprep.subr.bf16.mxu0 0
      %600 = vmatpush1.bf16.msra.mxu0 %v562
      %601 = vmatprep.subr.bf16.mxu0 0
      %602 = vmatpush1.bf16.msra.mxu0 %v563
      %603 = vmatprep.subr.bf16.mxu0 0
      %604 = vmatpush1.bf16.msra.mxu0 %v564
      %605 = vmatprep.subr.bf16.mxu0 0
      %606 = vmatpush1.bf16.msra.mxu0 %v565
      %607 = vmatprep.subr.bf16.mxu0 0
      %608 = vmatpush1.bf16.msra.mxu0 %v566
      %609 = vmatprep.subr.bf16.mxu0 0
      %610 = vmatpush1.bf16.msra.mxu0 %v567
      %611 = vmatprep.subr.bf16.mxu0 0
      %612 = vmatpush1.bf16.msra.mxu0 %v568
      %613 = vmatprep.subr.bf16.mxu0 0
      %614 = vmatpush1.bf16.msra.mxu0 %v569
      %615 = vmatprep.subr.bf16.mxu0 0
      %616 = vmatpush1.bf16.msra.mxu0 %v570
      %617 = vmatprep.subr.bf16.mxu0 0
      %618 = vmatpush1.bf16.msra.mxu0 %v571
      %619 = vmatprep.subr.bf16.mxu0 0
      %620 = vmatpush1.bf16.msra.mxu0 %v572
      %621 = vmatprep.mubr.bf16.mxu0 %v258
      %622 = vmatmul.mubr.bf16.gmra.mrb[0].mxu0 %v257
      %v623 = vpop.f32.mrb[0].mxu0
      %v624 = vadd.f32 0.0, %v623
      %v625 = vpop.f32.mrb[0].mxu0
      %v626 = vpop.f32.mrb[0].mxu0
      %v627 = vpop.f32.mrb[0].mxu0
      %628 = vdwg.mxu0
      %v661 = vunpack.c.l.b16 %v325
      %v662 = vunpack.c.l.b16 %v326
      %v663 = vunpack.c.l.b16 %v327
      %v664 = vunpack.c.l.b16 %v328
      %v665 = vunpack.c.l.b16 %v329
      %v666 = vunpack.c.l.b16 %v330
      %v667 = vunpack.c.l.b16 %v331
      %v668 = vunpack.c.l.b16 %v332
      %v669 = vunpack.c.l.b16 %v333
      %v670 = vunpack.c.l.b16 %v334
      %v671 = vunpack.c.l.b16 %v335
      %v672 = vunpack.c.l.b16 %v336
      %v673 = vunpack.c.l.b16 %v337
      %v674 = vunpack.c.l.b16 %v338
      %v675 = vunpack.c.l.b16 %v339
      %v676 = vunpack.c.l.b16 %v340
      %v677 = vunpack.c.l.b16 %v341
      %v678 = vunpack.c.l.b16 %v342
      %v679 = vunpack.c.l.b16 %v343
      %v680 = vunpack.c.l.b16 %v344
      %v681 = vunpack.c.l.b16 %v345
      %v682 = vunpack.c.l.b16 %v346
      %v683 = vunpack.c.l.b16 %v347
      %v684 = vunpack.c.l.b16 %v348
      %v685 = vunpack.c.l.b16 %v349
      %v686 = vunpack.c.l.b16 %v350
      %v687 = vunpack.c.l.b16 %v351
      %v688 = vunpack.c.l.b16 %v352
      %v689 = vunpack.c.l.b16 %v353
      %v690 = vunpack.c.l.b16 %v354
      %v691 = vunpack.c.l.b16 %v355
      %v692 = vunpack.c.l.b16 %v356
      %v693 = vpack.c.b16 %v662, %v661
      %v694 = vpack.c.b16 %v664, %v663
      %v695 = vpack.c.b16 %v666, %v665
      %v696 = vpack.c.b16 %v668, %v667
      %v697 = vpack.c.b16 %v670, %v669
      %v698 = vpack.c.b16 %v672, %v671
      %v699 = vpack.c.b16 %v674, %v673
      %v700 = vpack.c.b16 %v676, %v675
      %v701 = vpack.c.b16 %v678, %v677
      %v702 = vpack.c.b16 %v680, %v679
      %v703 = vpack.c.b16 %v682, %v681
      %v704 = vpack.c.b16 %v684, %v683
      %v705 = vpack.c.b16 %v686, %v685
      %v706 = vpack.c.b16 %v688, %v687
      %v707 = vpack.c.b16 %v690, %v689
      %v708 = vpack.c.b16 %v692, %v691
      %725 = vmatprep.subr.bf16.mxu0 0
      %726 = vmatpush1.bf16.msra.mxu0 %v693
      %727 = vmatprep.subr.bf16.mxu0 0
      %728 = vmatpush1.bf16.msra.mxu0 %v694
      %729 = vmatprep.subr.bf16.mxu0 0
      %730 = vmatpush1.bf16.msra.mxu0 %v695
      %731 = vmatprep.subr.bf16.mxu0 0
      %732 = vmatpush1.bf16.msra.mxu0 %v696
      %733 = vmatprep.subr.bf16.mxu0 0
      %734 = vmatpush1.bf16.msra.mxu0 %v697
      %735 = vmatprep.subr.bf16.mxu0 0
      %736 = vmatpush1.bf16.msra.mxu0 %v698
      %737 = vmatprep.subr.bf16.mxu0 0
      %738 = vmatpush1.bf16.msra.mxu0 %v699
      %739 = vmatprep.subr.bf16.mxu0 0
      %740 = vmatpush1.bf16.msra.mxu0 %v700
      %741 = vmatprep.subr.bf16.mxu0 0
      %742 = vmatpush1.bf16.msra.mxu0 %v701
      %743 = vmatprep.subr.bf16.mxu0 0
      %744 = vmatpush1.bf16.msra.mxu0 %v702
      %745 = vmatprep.subr.bf16.mxu0 0
      %746 = vmatpush1.bf16.msra.mxu0 %v703
      %747 = vmatprep.subr.bf16.mxu0 0
      %748 = vmatpush1.bf16.msra.mxu0 %v704
      %749 = vmatprep.subr.bf16.mxu0 0
      %750 = vmatpush1.bf16.msra.mxu0 %v705
      %751 = vmatprep.subr.bf16.mxu0 0
      %752 = vmatpush1.bf16.msra.mxu0 %v706
      %753 = vmatprep.subr.bf16.mxu0 0
      %754 = vmatpush1.bf16.msra.mxu0 %v707
      %755 = vmatprep.subr.bf16.mxu0 0
      %756 = vmatpush1.bf16.msra.mxu0 %v708
      %757 = vmatprep.mubr.bf16.mxu0 %v260
      %758 = vmatmul.mubr.bf16.gmra.mrb[0].mxu0 %v259
      %v759 = vpop.f32.mrb[0].mxu0
      %v760 = vadd.f32 0.0, %v759
      %v761 = vpop.f32.mrb[0].mxu0
      %v762 = vpop.f32.mrb[0].mxu0
      %v763 = vpop.f32.mrb[0].mxu0
      %764 = vdwg.mxu0
      %vm765 = vcmask 523264
      %766 = vst.msk [vmem:[%s222] sm:$0xff] %vm765, %v488
      %767 = vst.msk [vmem:[%s222 + $0x8] sm:$0xff] %vm765, %v624
      %768 = vst.msk [vmem:[%s222 + $0x10] sm:$0xff] %vm765, %v760
      %s769 = smul.u32 3, %s14
      %p770 = scmp.lt.s32.totalorder %s769, 8
      %s771 = scalar_select %p770, %s769, 8
      %s772 = smul.addr %s771, 8
      %s773 = scalar_lea.vmem %s3, %s772
      // Predicated region
      $region33: #{_qtransform_forward.4} parent=31 // pred_check
        %p774 = pneg %p110
      $region34: #{_qtransform_forward.4} parent=31 // pred_check_branch
        %776 = sbr.rel (%p774) target = $region36
      $region35: #{_qtransform_forward.4} parent=31 // pred_region
        %s777 = smul.u32 3, %s14
      $region36: #{_qtransform_forward.4} parent=31 // pred_fallthru
        _
    $region32: #{_qtransform_forward.4} parent=5 // pred_fallthru
      _
    %p778 = scmp.le.s32.totalorder 2, %s9
    // Predicated region
    $region37: #{_qtransform_forward.4} parent=5 // pred_check
      %p779 = pneg %p778
    $region38: #{_qtransform_forward.4} parent=5 // pred_check_branch
      %781 = sbr.rel (%p779) target = $region40
    $region39: #{_qtransform_forward.4} parent=5 // pred_region
      %s782 = ssub.s32 %s9, 2
      // Predicated region
      $region41: #{_qtransform_forward.4} parent=39 // pred_check
        %p783 = pneg %p116
      $region42: #{_qtransform_forward.4} parent=39 // pred_check_branch
        %785 = sbr.rel (%p783) target = $region44
      $region43: #{_qtransform_forward.4} parent=39 // pred_region
        %s786 = smul.u32 3, %s15
        %p787 = scmp.lt.s32.totalorder %s786, 8
        %s788 = scalar_select %p787, %s786, 8
        %s789 = smul.addr %s788, 8
        %s790 = scalar_lea.vmem %s3, %s789
      $region44: #{_qtransform_forward.4} parent=39 // pred_fallthru
        _
    $region40: #{_qtransform_forward.4} parent=5 // pred_fallthru
      _
  $region6: #{_qtransform_forward.4} parent=0 // loop_footer
    %s13 = sadd.s32 1, %s9
  $region7: #{_qtransform_forward.4} parent=0 // loop_footer_branch
    %8 = sbr.rel target = $region3
  $region8: #{_qtransform_forward.4} parent=0 // loop_exit
    _

// kernel: _qtransform_forward.5
$region0: #{_qtransform_forward.5}
  #allocation0 [shape = 'u32[]', space=smem, size = 0x4, offset = 0x4, fixed_abs, tag = 'smem constant byte address 0x4 - core index']
  #allocation1 [shape = 'u32[144,128]{1,0:T(1,128)}', space=vmem, size = 0x12000, scoped, tag = 'internal scratch']
  %s0 = inlined_call_operand.vmem [shape: bf16[64,9], index: 0, kind: input, shape index: {}]
  %s1 = inlined_call_operand.vmem [shape: bf16[9,512], index: 1, kind: input, shape index: {}]
  %s2 = inlined_call_operand.vmem [shape: f32[64,512], index: 2, kind: output, shape index: {}]
  %s3 = sld [smem:[#allocation0]]
  $region18: #{_qtransform_forward.5} parent=0
    _
  %s5 = ssub.s32 1, %s3
  %s6 = scalar_select 0, %s5, %s3
  // Predicated region
  $region2: #{_qtransform_forward.5} parent=0 // pred_check
    _
  $region3: #{_qtransform_forward.5} parent=0 // pred_check_branch
    %8 = sbr.rel (0) target = $region5
  $region4: #{_qtransform_forward.5} parent=0 // pred_region
    _
  $region5: #{_qtransform_forward.5} parent=0 // pred_fallthru
    _
  // Predicated region
  $region6: #{_qtransform_forward.5} parent=0 // pred_check
    _
  $region7: #{_qtransform_forward.5} parent=0 // pred_check_branch
    %10 = sbr.rel (0) target = $region9
  $region8: #{_qtransform_forward.5} parent=0 // pred_region
    _
  $region9: #{_qtransform_forward.5} parent=0 // pred_fallthru
    _
  %v12 = vld [vmem:[%s0] sm:$0xf]
  %v13 = vld [vmem:[%s0 + $0x4] sm:$0xf]
  %v14 = vld [vmem:[%s0 + $0x8] sm:$0xf]
  %v15 = vld [vmem:[%s0 + $0xc] sm:$0xf]
  %v16 = vld [vmem:[%s0 + $0x10] sm:$0xf]
  %v17 = vld [vmem:[%s0 + $0x14] sm:$0xf]
  %v18 = vld [vmem:[%s0 + $0x18] sm:$0xf]
  %v19 = vld [vmem:[%s0 + $0x1c] sm:$0xf]
  %v20 = vld [vmem:[%s1] sm:$0xff]
  %v21 = vld [vmem:[%s1 + $0x8] sm:$0xff]
  %v22 = vld [vmem:[%s1 + $0x10] sm:$0x11]
  %v23 = vld [vmem:[%s1 + $0x18] sm:$0x11]
  %v32 = vunpack.c.l.b16 %v12
  %v33 = vunpack.c.l.b16 %v13
  %v34 = vunpack.c.l.b16 %v14
  %v35 = vunpack.c.l.b16 %v15
  %v36 = vunpack.c.l.b16 %v16
  %v37 = vunpack.c.l.b16 %v17
  %v38 = vunpack.c.l.b16 %v18
  %v39 = vunpack.c.l.b16 %v19
  %v40 = vpack.c.b16 %v33, %v32
  %v41 = vpack.c.b16 %v35, %v34
  %v42 = vpack.c.b16 %v37, %v36
  %v43 = vpack.c.b16 %v39, %v38
  %v48 = vunpack.c.l.b16 %v20
  %v49 = vunpack.c.h.b16 %v20
  %v50 = vunpack.c.l.b16 %v21
  %v51 = vunpack.c.h.b16 %v21
  %v52 = vunpack.c.l.b16 %v22
  %v53 = vunpack.c.h.b16 %v22
  %v54 = vunpack.c.l.b16 %v23
  %v55 = vunpack.c.h.b16 %v23
  %v56 = vpack.c.b16 %v52, %v48
  %v57 = vpack.c.b16 %v53, %v49
  %v58 = vpack.c.b16 %v54, %v50
  %v59 = vpack.c.b16 %v55, %v51
  %vm60 = vcmask 72704
  %v62 = vsel %vm60, %v40, 0
  %v65 = vsel %vm60, %v41, 0
  %v68 = vsel %vm60, %v42, 0
  %v71 = vsel %vm60, %v43, 0
  %vm73 = vcmask 1043456
  %vm74 = vcmask 1044480
  %v75 = vsel %vm73, 4294967295, 65535
  %v76 = vsel %vm74, %v75, 0
  %v78 = vand.u32 %v56, %v76
  %v81 = vand.u32 %v57, %v76
  %v84 = vand.u32 %v58, %v76
  %v87 = vand.u32 %v59, %v76
  %89 = vmatprep.subr.bf16.mxu0 %v81
  %90 = vmatpush1.bf16.msra.mxu0 %v78
  %91 = vmatprep.subr.bf16.mxu0 0
  %92 = vmatpush1.bf16.msra.mxu0 0
  %93 = vmatprep.subr.bf16.mxu0 0
  %94 = vmatpush1.bf16.msra.mxu0 0
  %95 = vmatprep.subr.bf16.mxu0 0
  %96 = vmatpush1.bf16.msra.mxu0 0
  %97 = vmatprep.subr.bf16.mxu0 0
  %98 = vmatpush1.bf16.msra.mxu0 0
  %99 = vmatprep.subr.bf16.mxu0 0
  %100 = vmatpush1.bf16.msra.mxu0 0
  %101 = vmatprep.subr.bf16.mxu0 0
  %102 = vmatpush1.bf16.msra.mxu0 0
  %103 = vmatprep.subr.bf16.mxu0 0
  %104 = vmatpush1.bf16.msra.mxu0 0
  %105 = vmatprep.subr.bf16.mxu0 0
  %106 = vmatpush1.bf16.msra.mxu0 0
  %107 = vmatprep.subr.bf16.mxu0 0
  %108 = vmatpush1.bf16.msra.mxu0 0
  %109 = vmatprep.subr.bf16.mxu0 0
  %110 = vmatpush1.bf16.msra.mxu0 0
  %111 = vmatprep.subr.bf16.mxu0 0
  %112 = vmatpush1.bf16.msra.mxu0 0
  %113 = vmatprep.subr.bf16.mxu0 0
  %114 = vmatpush1.bf16.msra.mxu0 0
  %115 = vmatprep.subr.bf16.mxu0 0
  %116 = vmatpush1.bf16.msra.mxu0 0
  %117 = vmatprep.subr.bf16.mxu0 0
  %118 = vmatpush1.bf16.msra.mxu0 0
  %119 = vmatprep.subr.bf16.mxu0 0
  %120 = vmatpush1.bf16.msra.mxu0 0
  %121 = vmatprep.mubr.bf16.mxu0 0
  %122 = vmatmul.mubr.bf16.gmra.mrb[0].mxu0 %v62
  %v123 = vpop.f32.mrb[0].mxu0
  %v124 = vadd.f32 0.0, %v123
  %v125 = vpop.f32.mrb[0].mxu0
  %v126 = vadd.f32 0.0, %v125
  %v127 = vpop.f32.mrb[0].mxu0
  %v128 = vadd.f32 0.0, %v127
  %v129 = vpop.f32.mrb[0].mxu0
  %v130 = vadd.f32 0.0, %v129
  %131 = vmatprep.mubr.bf16.mxu0 0
  %132 = vmatmul.mubr.bf16.gmra.mrb[0].mxu0 %v65
  %v133 = vpop.f32.mrb[0].mxu0
  %v134 = vadd.f32 0.0, %v133
  %v135 = vpop.f32.mrb[0].mxu0
  %v136 = vadd.f32 0.0, %v135
  %v137 = vpop.f32.mrb[0].mxu0
  %v138 = vadd.f32 0.0, %v137
  %v139 = vpop.f32.mrb[0].mxu0
  %v140 = vadd.f32 0.0, %v139
  %141 = vmatprep.mubr.bf16.mxu0 0
  %142 = vmatmul.mubr.bf16.gmra.mrb[0].mxu0 %v68
  %v143 = vpop.f32.mrb[0].mxu0
  %v144 = vadd.f32 0.0, %v143
  %v145 = vpop.f32.mrb[0].mxu0
  %v146 = vadd.f32 0.0, %v145
  %v147 = vpop.f32.mrb[0].mxu0
  %v148 = vadd.f32 0.0, %v147
  %v149 = vpop.f32.mrb[0].mxu0
  %v150 = vadd.f32 0.0, %v149
  %151 = vmatprep.mubr.bf16.mxu0 0
  %152 = vmatmul.mubr.bf16.gmra.mrb[0].mxu0 %v71
  %v153 = vpop.f32.mrb[0].mxu0
  %v154 = vadd.f32 0.0, %v153
  %v155 = vpop.f32.mrb[0].mxu0
  %v156 = vadd.f32 0.0, %v155
  %v157 = vpop.f32.mrb[0].mxu0
  %v158 = vadd.f32 0.0, %v157
  %v159 = vpop.f32.mrb[0].mxu0
  %v160 = vadd.f32 0.0, %v159
  %161 = vdwg.mxu0
  %162 = vmatprep.subr.bf16.mxu0 %v87
  %163 = vmatpush1.bf16.msra.mxu0 %v84
  %164 = vmatprep.subr.bf16.mxu0 0
  %165 = vmatpush1.bf16.msra.mxu0 0
  %166 = vmatprep.subr.bf16.mxu0 0
  %167 = vmatpush1.bf16.msra.mxu0 0
  %168 = vmatprep.subr.bf16.mxu0 0
  %169 = vmatpush1.bf16.msra.mxu0 0
  %170 = vmatprep.subr.bf16.mxu0 0
  %171 = vmatpush1.bf16.msra.mxu0 0
  %172 = vmatprep.subr.bf16.mxu0 0
  %173 = vmatpush1.bf16.msra.mxu0 0
  %174 = vmatprep.subr.bf16.mxu0 0
  %175 = vmatpush1.bf16.msra.mxu0 0
  %176 = vmatprep.subr.bf16.mxu0 0
  %177 = vmatpush1.bf16.msra.mxu0 0
  %178 = vmatprep.subr.bf16.mxu0 0
  %179 = vmatpush1.bf16.msra.mxu0 0
  %180 = vmatprep.subr.bf16.mxu0 0
  %181 = vmatpush1.bf16.msra.mxu0 0
  %182 = vmatprep.subr.bf16.mxu0 0
  %183 = vmatpush1.bf16.msra.mxu0 0
  %184 = vmatprep.subr.bf16.mxu0 0
  %185 = vmatpush1.bf16.msra.mxu0 0
  %186 = vmatprep.subr.bf16.mxu0 0
  %187 = vmatpush1.bf16.msra.mxu0 0
  %188 = vmatprep.subr.bf16.mxu0 0
  %189 = vmatpush1.bf16.msra.mxu0 0
  %190 = vmatprep.subr.bf16.mxu0 0
  %191 = vmatpush1.bf16.msra.mxu0 0
  %192 = vmatprep.subr.bf16.mxu0 0
  %193 = vmatpush1.bf16.msra.mxu0 0
  %194 = vmatprep.mubr.bf16.mxu0 0
  %195 = vmatmul.mubr.bf16.gmra.mrb[0].mxu0 %v62
  %v196 = vpop.f32.mrb[0].mxu0
  %v197 = vadd.f32 0.0, %v196
  %v198 = vpop.f32.mrb[0].mxu0
  %v199 = vadd.f32 0.0, %v198
  %v200 = vpop.f32.mrb[0].mxu0
  %v201 = vadd.f32 0.0, %v200
  %v202 = vpop.f32.mrb[0].mxu0
  %v203 = vadd.f32 0.0, %v202
  %204 = vmatprep.mubr.bf16.mxu0 0
  %205 = vmatmul.mubr.bf16.gmra.mrb[0].mxu0 %v65
  %v206 = vpop.f32.mrb[0].mxu0
  %v207 = vadd.f32 0.0, %v206
  %v208 = vpop.f32.mrb[0].mxu0
  %v209 = vadd.f32 0.0, %v208
  %v210 = vpop.f32.mrb[0].mxu0
  %v211 = vadd.f32 0.0, %v210
  %v212 = vpop.f32.mrb[0].mxu0
  %v213 = vadd.f32 0.0, %v212
  %214 = vmatprep.mubr.bf16.mxu0 0
  %215 = vmatmul.mubr.bf16.gmra.mrb[0].mxu0 %v68
  %v216 = vpop.f32.mrb[0].mxu0
  %v217 = vadd.f32 0.0, %v216
  %v218 = vpop.f32.mrb[0].mxu0
  %v219 = vadd.f32 0.0, %v218
  %v220 = vpop.f32.mrb[0].mxu0
  %v221 = vadd.f32 0.0, %v220
  %v222 = vpop.f32.mrb[0].mxu0
  %v223 = vadd.f32 0.0, %v222
  %224 = vmatprep.mubr.bf16.mxu0 0
  %225 = vmatmul.mubr.bf16.gmra.mrb[0].mxu0 %v71
  %v226 = vpop.f32.mrb[0].mxu0
  %v227 = vadd.f32 0.0, %v226
  %v228 = vpop.f32.mrb[0].mxu0
  %v229 = vadd.f32 0.0, %v228
  %v230 = vpop.f32.mrb[0].mxu0
  %v231 = vadd.f32 0.0, %v230
  %v232 = vpop.f32.mrb[0].mxu0
  %v233 = vadd.f32 0.0, %v232
  %234 = vdwg.mxu0
  %235 = vst [vmem:[%s2] sm:$0xff] %v124
  %236 = vst [vmem:[%s2 + $0x8] sm:$0xff] %v126
  %237 = vst [vmem:[%s2 + $0x10] sm:$0xff] %v197
  %238 = vst [vmem:[%s2 + $0x18] sm:$0xff] %v199
  %239 = vst [vmem:[%s2 + $0x20] sm:$0xff] %v128
  %240 = vst [vmem:[%s2 + $0x28] sm:$0xff] %v130
  %241 = vst [vmem:[%s2 + $0x30] sm:$0xff] %v201
  %242 = vst [vmem:[%s2 + $0x38] sm:$0xff] %v203
  %243 = vst [vmem:[%s2 + $0x40] sm:$0xff] %v134
  %244 = vst [vmem:[%s2 + $0x48] sm:$0xff] %v136
  %245 = vst [vmem:[%s2 + $0x50] sm:$0xff] %v207
  %246 = vst [vmem:[%s2 + $0x58] sm:$0xff] %v209
  %247 = vst [vmem:[%s2 + $0x60] sm:$0xff] %v138
  %248 = vst [vmem:[%s2 + $0x68] sm:$0xff] %v140
  %249 = vst [vmem:[%s2 + $0x70] sm:$0xff] %v211
  %250 = vst [vmem:[%s2 + $0x78] sm:$0xff] %v213
  %251 = vst [vmem:[%s2 + $0x80] sm:$0xff] %v144
  %252 = vst [vmem:[%s2 + $0x88] sm:$0xff] %v146
  %253 = vst [vmem:[%s2 + $0x90] sm:$0xff] %v217
  %254 = vst [vmem:[%s2 + $0x98] sm:$0xff] %v219
  %255 = vst [vmem:[%s2 + $0xa0] sm:$0xff] %v148
  %256 = vst [vmem:[%s2 + $0xa8] sm:$0xff] %v150
  %257 = vst [vmem:[%s2 + $0xb0] sm:$0xff] %v221
  %258 = vst [vmem:[%s2 + $0xb8] sm:$0xff] %v223
  %259 = vst [vmem:[%s2 + $0xc0] sm:$0xff] %v154
  %260 = vst [vmem:[%s2 + $0xc8] sm:$0xff] %v156
  %261 = vst [vmem:[%s2 + $0xd0] sm:$0xff] %v227
  %262 = vst [vmem:[%s2 + $0xd8] sm:$0xff] %v229
  %263 = vst [vmem:[%s2 + $0xe0] sm:$0xff] %v158
  %264 = vst [vmem:[%s2 + $0xe8] sm:$0xff] %v160
  %265 = vst [vmem:[%s2 + $0xf0] sm:$0xff] %v231
  %266 = vst [vmem:[%s2 + $0xf8] sm:$0xff] %v233
  // Predicated region
  $region10: #{_qtransform_forward.5} parent=0 // pred_check
    _
  $region11: #{_qtransform_forward.5} parent=0 // pred_check_branch
    %268 = sbr.rel (0) target = $region13
  $region12: #{_qtransform_forward.5} parent=0 // pred_region
    _
  $region13: #{_qtransform_forward.5} parent=0 // pred_fallthru
    _
  // Predicated region
  $region14: #{_qtransform_forward.5} parent=0 // pred_check
    _
  $region15: #{_qtransform_forward.5} parent=0 // pred_check_branch
    %270 = sbr.rel (0) target = $region17
  $region16: #{_qtransform_forward.5} parent=0 // pred_region
    _
  $region17: #{_qtransform_forward.5} parent=0 // pred_fallthru
    _

</llo_original>
